<compile_context>
chip_gen: v6e
topology: v6e:2x2x1
jax: 0.10.0
libtpu: 0.0.40
codegen_flags: <defaults>
</compile_context>

<pallas_src>
import functools
import math

import jax
import jax.numpy as jnp
from jax.experimental import pallas as pl
from jax.experimental.pallas import tpu as pltpu  # noqa: F401  (kept for TPU-specific tuning hooks)


# ---------------------------------------------------------------------------
# in-kernel math helpers (also reused by the pure-JAX reference)
# ---------------------------------------------------------------------------
def _erf(x):
    # Abramowitz & Stegun 7.1.26 polynomial erf (max abs err ~1.5e-7 ~ f32 eps),
    # matches torch.nn.GELU() (exact erf formulation) to float32 tolerance.
    p = 0.3275911
    a1, a2, a3, a4, a5 = 0.254829592, -0.284496736, 1.421413741, -1.453152027, 1.061405429
    sgn = jnp.where(x >= 0.0, 1.0, -1.0)
    ax = jnp.abs(x)
    t = 1.0 / (1.0 + p * ax)
    poly = ((((a5 * t + a4) * t + a3) * t + a2) * t + a1) * t
    return sgn * (1.0 - poly * jnp.exp(-ax * ax))


def _gelu_exact(x):
    return 0.5 * x * (1.0 + _erf(x * 0.7071067811865476))


def _layernorm(x, g, b, eps=1e-5):
    mean = jnp.mean(x, axis=-1, keepdims=True)
    var = jnp.mean((x - mean) ** 2, axis=-1, keepdims=True)
    return (x - mean) * jax.lax.rsqrt(var + eps) * g + b


# ---------------------------------------------------------------------------
# fused encoder-layer kernel
# ---------------------------------------------------------------------------
def encoder_layer_kernel(x_ref, ln1g_ref, ln1b_ref, wqkv_ref, bqkv_ref,
                         wo_ref, bo_ref, ln2g_ref, ln2b_ref,
                         w1_ref, b1_ref, w2_ref, b2_ref, o_ref,
                         *, nhead, batch, seqlen):
    B, T = batch, seqlen
    x = x_ref[...]                                  # (B*T, D)  batch folded into rows
    D = x.shape[-1]
    hd = D // nhead
    scale = 1.0 / math.sqrt(hd)

    # --- pre-norm + fused QKV projection over all B*T rows --------------------
    xn = _layernorm(x, ln1g_ref[...], ln1b_ref[...])
    qkv = jnp.dot(xn, wqkv_ref[...], preferred_element_type=jnp.float32) + bqkv_ref[...]
    q = qkv[:, 0:D]
    k = qkv[:, D:2 * D]
    v = qkv[:, 2 * D:3 * D]

    # --- head-batched self-attention: stack to (B*nhead, T, hd) ---------------
    def split_heads(z):
        return jnp.stack(
            [z[b * T:(b + 1) * T, h * hd:(h + 1) * hd]
             for b in range(B) for h in range(nhead)], axis=0)

    qh = split_heads(q) * scale
    kh = split_heads(k)
    vh = split_heads(v)

    s = jnp.einsum('bqd,bkd->bqk', qh, kh, preferred_element_type=jnp.float32)
    s = s - jnp.max(s, axis=-1, keepdims=True)
    e = jnp.exp(s)
    p = e * pl.reciprocal(jnp.sum(e, axis=-1, keepdims=True), approx=True)
    oh = jnp.einsum('bqk,bkd->bqd', p, vh, preferred_element_type=jnp.float32)  # (B*nh, T, hd)

    # re-concatenate heads -> (B*T, D): out-projection becomes ONE matmul
    attn_cat = jnp.concatenate(
        [jnp.concatenate([oh[b * nhead + h] for h in range(nhead)], axis=-1)
         for b in range(B)], axis=0)
    attn = jnp.dot(attn_cat, wo_ref[...], preferred_element_type=jnp.float32) + bo_ref[...]

    x1 = x + attn                                   # residual 1 (xenc + x)

    # --- pre-norm + MLP --------------------------------------------------------
    xn2 = _layernorm(x1, ln2g_ref[...], ln2b_ref[...])
    h1 = _gelu_exact(jnp.dot(xn2, w1_ref[...], preferred_element_type=jnp.float32)
                     + b1_ref[...])
    ff = jnp.dot(h1, w2_ref[...], preferred_element_type=jnp.float32) + b2_ref[...]
    o_ref[...] = ff + x1                            # residual 2


# ---------------------------------------------------------------------------
# wrapper: one pallas_call, whole arrays resident in VMEM (no grid loop)
# ---------------------------------------------------------------------------
def vit_encoder_layer(x, params, *, nhead):
    B, T, D = x.shape
    assert D % nhead == 0, "d_model must be divisible by nhead"
    x_flat = x.reshape(B * T, D)
    kernel = functools.partial(encoder_layer_kernel, nhead=nhead, batch=B, seqlen=T)
    out_flat = pl.pallas_call(
        kernel,
        out_shape=jax.ShapeDtypeStruct((B * T, D), jnp.float32),
    )(x_flat, params["ln1_g"], params["ln1_b"], params["wqkv"], params["bqkv"],
      params["wo"], params["bo"], params["ln2_g"], params["ln2_b"],
      params["w1"], params["b1"], params["w2"], params["b2"])
    return out_flat.reshape(B, T, D)


# ---------------------------------------------------------------------------
# pure-JAX reference (same math, no Pallas) — used only for a sanity check
# ---------------------------------------------------------------------------
def _reference_forward(x, params, *, nhead):
    B, T, D = x.shape
    hd = D // nhead
    xf = x.reshape(B * T, D)
    xn = _layernorm(xf, params["ln1_g"], params["ln1_b"])
    qkv = xn @ params["wqkv"] + params["bqkv"]
    q, k, v = qkv[:, :D], qkv[:, D:2 * D], qkv[:, 2 * D:]
    q = q.reshape(B, T, nhead, hd).transpose(0, 2, 1, 3)
    k = k.reshape(B, T, nhead, hd).transpose(0, 2, 1, 3)
    v = v.reshape(B, T, nhead, hd).transpose(0, 2, 1, 3)
    s = jnp.einsum('bhqd,bhkd->bhqk', q, k) / math.sqrt(hd)
    p = jax.nn.softmax(s, axis=-1)
    o = jnp.einsum('bhqk,bhkd->bhqd', p, v).transpose(0, 2, 1, 3).reshape(B * T, D)
    attn = o @ params["wo"] + params["bo"]
    x1 = xf + attn
    xn2 = _layernorm(x1, params["ln2_g"], params["ln2_b"])
    h1 = _gelu_exact(xn2 @ params["w1"] + params["b1"])
    y = h1 @ params["w2"] + params["b2"] + x1
    return y.reshape(B, T, D)


# ---------------------------------------------------------------------------
# parameter init (deterministic; matches PyTorch layer conventions in spirit)
# ---------------------------------------------------------------------------
def init_params(key, d_model):
    D = d_model
    ks = jax.random.split(key, 4)

    def xavier(k, fan_out, fan_in, gain=1.0):
        limit = gain * math.sqrt(6.0 / (fan_in + fan_out))
        return jax.random.uniform(k, (fan_out, fan_in), jnp.float32, -limit, limit)

    return {
        "ln1_g": jnp.ones((1, D), jnp.float32),
        "ln1_b": jnp.zeros((1, D), jnp.float32),
        "wqkv": xavier(ks[0], 3 * D, D).T,                    # (D, 3D) == in_proj_weight.T
        "bqkv": jnp.zeros((1, 3 * D), jnp.float32),
        "wo": xavier(ks[1], D, D).T,                          # (D, D)  == out_proj.weight.T
        "bo": jnp.zeros((1, D), jnp.float32),
        "ln2_g": jnp.ones((1, D), jnp.float32),
        "ln2_b": jnp.zeros((1, D), jnp.float32),
        "w1": xavier(ks[2], 2 * D, D, gain=math.sqrt(2.0)).T,  # (D, 2D)
        "b1": jnp.zeros((1, 2 * D), jnp.float32),
        "w2": xavier(ks[3], D, 2 * D, gain=math.sqrt(2.0)).T,  # (2D, D)
        "b2": jnp.zeros((1, D), jnp.float32),
    }


if __name__ == "__main__":
    # small shapes consistent with the module: batch=2, seq=16 tokens, d_model=32, 4 heads
    B, T, D, nhead = 2, 16, 32, 4

    key = jax.random.PRNGKey(0)
    kx, kp = jax.random.split(key)
    x = jax.random.normal(kx, (B, T, D), jnp.float32)
    params = init_params(kp, d_model=D)

    fwd = jax.jit(functools.partial(vit_encoder_layer, nhead=nhead))
    out = fwd(x, params)
    jax.block_until_ready(out)

    assert out.shape == (B, T, D) and out.dtype == jnp.float32
    assert bool(jnp.isfinite(out).all())

    # numerical sanity check vs. a pure-JAX reference (loose tolerance: the kernel
    # uses the EUP approximate reciprocal in the softmax denominator)
    ref = _reference_forward(x, params, nhead=nhead)
    assert bool(jnp.allclose(out, ref, rtol=3e-2, atol=3e-2)), "kernel/reference mismatch"

    print("KERNEL_OK")
</pallas_src>

<mosaic_0001>
module attributes {stable_mosaic.version = 11 : i64} {
  func.func @encoder_layer_kernel(%arg0: memref<32x32xf32, #tpu.memory_space<vmem>>, %arg1: memref<1x32xf32, #tpu.memory_space<vmem>>, %arg2: memref<1x32xf32, #tpu.memory_space<vmem>>, %arg3: memref<32x96xf32, #tpu.memory_space<vmem>>, %arg4: memref<1x96xf32, #tpu.memory_space<vmem>>, %arg5: memref<32x32xf32, #tpu.memory_space<vmem>>, %arg6: memref<1x32xf32, #tpu.memory_space<vmem>>, %arg7: memref<1x32xf32, #tpu.memory_space<vmem>>, %arg8: memref<1x32xf32, #tpu.memory_space<vmem>>, %arg9: memref<32x64xf32, #tpu.memory_space<vmem>>, %arg10: memref<1x64xf32, #tpu.memory_space<vmem>>, %arg11: memref<64x32xf32, #tpu.memory_space<vmem>>, %arg12: memref<1x32xf32, #tpu.memory_space<vmem>>, %arg13: memref<32x32xf32, #tpu.memory_space<vmem>>) attributes {dimension_semantics = [], scalar_prefetch = 0 : i64, scratch_operands = 0 : i64, tpu.core_type = #tpu.core_type<tc>} {
    %c0 = arith.constant 0 : index
    %c0_0 = arith.constant 0 : index
    %0 = vector.load %arg0[%c0, %c0_0] : memref<32x32xf32, #tpu.memory_space<vmem>>, vector<32x32xf32>
    %c0_1 = arith.constant 0 : index
    %c0_2 = arith.constant 0 : index
    %1 = vector.load %arg1[%c0_1, %c0_2] : memref<1x32xf32, #tpu.memory_space<vmem>>, vector<1x32xf32>
    %c0_3 = arith.constant 0 : index
    %c0_4 = arith.constant 0 : index
    %2 = vector.load %arg2[%c0_3, %c0_4] : memref<1x32xf32, #tpu.memory_space<vmem>>, vector<1x32xf32>
    %cst = arith.constant dense<0.000000e+00> : vector<32xf32>
    %3 = vector.multi_reduction <add>, %0, %cst [1] : vector<32x32xf32> to vector<32xf32>
    %4 = vector.shape_cast %3 : vector<32xf32> to vector<32x1xf32>
    %cst_5 = arith.constant 3.200000e+01 : f32
    %5 = vector.broadcast %cst_5 : f32 to vector<32x1xf32>
    %6 = arith.divf %4, %5 : vector<32x1xf32>
    %7 = vector.broadcast %6 : vector<32x1xf32> to vector<32x32xf32>
    %8 = arith.subf %0, %7 : vector<32x32xf32>
    %9 = arith.mulf %8, %8 : vector<32x32xf32>
    %cst_6 = arith.constant dense<0.000000e+00> : vector<32xf32>
    %10 = vector.multi_reduction <add>, %9, %cst_6 [1] : vector<32x32xf32> to vector<32xf32>
    %11 = vector.shape_cast %10 : vector<32xf32> to vector<32x1xf32>
    %cst_7 = arith.constant 3.200000e+01 : f32
    %12 = vector.broadcast %cst_7 : f32 to vector<32x1xf32>
    %13 = arith.divf %11, %12 : vector<32x1xf32>
    %14 = vector.broadcast %6 : vector<32x1xf32> to vector<32x32xf32>
    %15 = arith.subf %0, %14 : vector<32x32xf32>
    %cst_8 = arith.constant 9.99999974E-6 : f32
    %16 = vector.broadcast %cst_8 : f32 to vector<32x1xf32>
    %17 = arith.addf %13, %16 : vector<32x1xf32>
    %18 = math.rsqrt %17 : vector<32x1xf32>
    %19 = vector.broadcast %18 : vector<32x1xf32> to vector<32x32xf32>
    %20 = arith.mulf %15, %19 : vector<32x32xf32>
    %21 = vector.broadcast %1 : vector<1x32xf32> to vector<32x32xf32>
    %22 = arith.mulf %20, %21 : vector<32x32xf32>
    %23 = vector.broadcast %2 : vector<1x32xf32> to vector<32x32xf32>
    %24 = arith.addf %22, %23 : vector<32x32xf32>
    %c0_9 = arith.constant 0 : index
    %c0_10 = arith.constant 0 : index
    %25 = vector.load %arg3[%c0_9, %c0_10] : memref<32x96xf32, #tpu.memory_space<vmem>>, vector<32x96xf32>
    %cst_11 = arith.constant dense<0.000000e+00> : vector<32x96xf32>
    %26 = tpu.matmul %24, %25, %cst_11 {dimension_numbers = #tpu.dot_dimension_numbers<[1], [0], [0], [1], [0, 0, 1, 1], [], []>} : vector<32x32xf32>, vector<32x96xf32>, vector<32x96xf32> -> vector<32x96xf32>
    %c0_12 = arith.constant 0 : index
    %c0_13 = arith.constant 0 : index
    %27 = vector.load %arg4[%c0_12, %c0_13] : memref<1x96xf32, #tpu.memory_space<vmem>>, vector<1x96xf32>
    %28 = vector.broadcast %27 : vector<1x96xf32> to vector<32x96xf32>
    %29 = arith.addf %26, %28 : vector<32x96xf32>
    %30 = vector.extract_strided_slice %29 {offsets = [0, 0], sizes = [32, 32], strides = [1, 1]} : vector<32x96xf32> to vector<32x32xf32>
    %31 = vector.extract_strided_slice %29 {offsets = [0, 32], sizes = [32, 32], strides = [1, 1]} : vector<32x96xf32> to vector<32x32xf32>
    %32 = vector.extract_strided_slice %29 {offsets = [0, 64], sizes = [32, 32], strides = [1, 1]} : vector<32x96xf32> to vector<32x32xf32>
    %33 = vector.extract_strided_slice %30 {offsets = [0, 0], sizes = [16, 8], strides = [1, 1]} : vector<32x32xf32> to vector<16x8xf32>
    %34 = vector.extract_strided_slice %30 {offsets = [0, 8], sizes = [16, 8], strides = [1, 1]} : vector<32x32xf32> to vector<16x8xf32>
    %35 = vector.extract_strided_slice %30 {offsets = [0, 16], sizes = [16, 8], strides = [1, 1]} : vector<32x32xf32> to vector<16x8xf32>
    %36 = vector.extract_strided_slice %30 {offsets = [0, 24], sizes = [16, 8], strides = [1, 1]} : vector<32x32xf32> to vector<16x8xf32>
    %37 = vector.extract_strided_slice %30 {offsets = [16, 0], sizes = [16, 8], strides = [1, 1]} : vector<32x32xf32> to vector<16x8xf32>
    %38 = vector.extract_strided_slice %30 {offsets = [16, 8], sizes = [16, 8], strides = [1, 1]} : vector<32x32xf32> to vector<16x8xf32>
    %39 = vector.extract_strided_slice %30 {offsets = [16, 16], sizes = [16, 8], strides = [1, 1]} : vector<32x32xf32> to vector<16x8xf32>
    %40 = vector.extract_strided_slice %30 {offsets = [16, 24], sizes = [16, 8], strides = [1, 1]} : vector<32x32xf32> to vector<16x8xf32>
    %41 = vector.shape_cast %33 : vector<16x8xf32> to vector<1x16x8xf32>
    %42 = vector.shape_cast %34 : vector<16x8xf32> to vector<1x16x8xf32>
    %43 = vector.shape_cast %35 : vector<16x8xf32> to vector<1x16x8xf32>
    %44 = vector.shape_cast %36 : vector<16x8xf32> to vector<1x16x8xf32>
    %45 = vector.shape_cast %37 : vector<16x8xf32> to vector<1x16x8xf32>
    %46 = vector.shape_cast %38 : vector<16x8xf32> to vector<1x16x8xf32>
    %47 = vector.shape_cast %39 : vector<16x8xf32> to vector<1x16x8xf32>
    %48 = vector.shape_cast %40 : vector<16x8xf32> to vector<1x16x8xf32>
    %49 = tpu.concatenate %41, %42, %43, %44, %45, %46, %47, %48 in 0 : vector<1x16x8xf32>, vector<1x16x8xf32>, vector<1x16x8xf32>, vector<1x16x8xf32>, vector<1x16x8xf32>, vector<1x16x8xf32>, vector<1x16x8xf32>, vector<1x16x8xf32> -> vector<8x16x8xf32>
    %cst_14 = arith.constant 0.353553385 : f32
    %50 = vector.broadcast %cst_14 : f32 to vector<8x16x8xf32>
    %51 = arith.mulf %49, %50 : vector<8x16x8xf32>
    %52 = vector.extract_strided_slice %31 {offsets = [0, 0], sizes = [16, 8], strides = [1, 1]} : vector<32x32xf32> to vector<16x8xf32>
    %53 = vector.extract_strided_slice %31 {offsets = [0, 8], sizes = [16, 8], strides = [1, 1]} : vector<32x32xf32> to vector<16x8xf32>
    %54 = vector.extract_strided_slice %31 {offsets = [0, 16], sizes = [16, 8], strides = [1, 1]} : vector<32x32xf32> to vector<16x8xf32>
    %55 = vector.extract_strided_slice %31 {offsets = [0, 24], sizes = [16, 8], strides = [1, 1]} : vector<32x32xf32> to vector<16x8xf32>
    %56 = vector.extract_strided_slice %31 {offsets = [16, 0], sizes = [16, 8], strides = [1, 1]} : vector<32x32xf32> to vector<16x8xf32>
    %57 = vector.extract_strided_slice %31 {offsets = [16, 8], sizes = [16, 8], strides = [1, 1]} : vector<32x32xf32> to vector<16x8xf32>
    %58 = vector.extract_strided_slice %31 {offsets = [16, 16], sizes = [16, 8], strides = [1, 1]} : vector<32x32xf32> to vector<16x8xf32>
    %59 = vector.extract_strided_slice %31 {offsets = [16, 24], sizes = [16, 8], strides = [1, 1]} : vector<32x32xf32> to vector<16x8xf32>
    %60 = vector.shape_cast %52 : vector<16x8xf32> to vector<1x16x8xf32>
    %61 = vector.shape_cast %53 : vector<16x8xf32> to vector<1x16x8xf32>
    %62 = vector.shape_cast %54 : vector<16x8xf32> to vector<1x16x8xf32>
    %63 = vector.shape_cast %55 : vector<16x8xf32> to vector<1x16x8xf32>
    %64 = vector.shape_cast %56 : vector<16x8xf32> to vector<1x16x8xf32>
    %65 = vector.shape_cast %57 : vector<16x8xf32> to vector<1x16x8xf32>
    %66 = vector.shape_cast %58 : vector<16x8xf32> to vector<1x16x8xf32>
    %67 = vector.shape_cast %59 : vector<16x8xf32> to vector<1x16x8xf32>
    %68 = tpu.concatenate %60, %61, %62, %63, %64, %65, %66, %67 in 0 : vector<1x16x8xf32>, vector<1x16x8xf32>, vector<1x16x8xf32>, vector<1x16x8xf32>, vector<1x16x8xf32>, vector<1x16x8xf32>, vector<1x16x8xf32>, vector<1x16x8xf32> -> vector<8x16x8xf32>
    %69 = vector.extract_strided_slice %32 {offsets = [0, 0], sizes = [16, 8], strides = [1, 1]} : vector<32x32xf32> to vector<16x8xf32>
    %70 = vector.extract_strided_slice %32 {offsets = [0, 8], sizes = [16, 8], strides = [1, 1]} : vector<32x32xf32> to vector<16x8xf32>
    %71 = vector.extract_strided_slice %32 {offsets = [0, 16], sizes = [16, 8], strides = [1, 1]} : vector<32x32xf32> to vector<16x8xf32>
    %72 = vector.extract_strided_slice %32 {offsets = [0, 24], sizes = [16, 8], strides = [1, 1]} : vector<32x32xf32> to vector<16x8xf32>
    %73 = vector.extract_strided_slice %32 {offsets = [16, 0], sizes = [16, 8], strides = [1, 1]} : vector<32x32xf32> to vector<16x8xf32>
    %74 = vector.extract_strided_slice %32 {offsets = [16, 8], sizes = [16, 8], strides = [1, 1]} : vector<32x32xf32> to vector<16x8xf32>
    %75 = vector.extract_strided_slice %32 {offsets = [16, 16], sizes = [16, 8], strides = [1, 1]} : vector<32x32xf32> to vector<16x8xf32>
    %76 = vector.extract_strided_slice %32 {offsets = [16, 24], sizes = [16, 8], strides = [1, 1]} : vector<32x32xf32> to vector<16x8xf32>
    %77 = vector.shape_cast %69 : vector<16x8xf32> to vector<1x16x8xf32>
    %78 = vector.shape_cast %70 : vector<16x8xf32> to vector<1x16x8xf32>
    %79 = vector.shape_cast %71 : vector<16x8xf32> to vector<1x16x8xf32>
    %80 = vector.shape_cast %72 : vector<16x8xf32> to vector<1x16x8xf32>
    %81 = vector.shape_cast %73 : vector<16x8xf32> to vector<1x16x8xf32>
    %82 = vector.shape_cast %74 : vector<16x8xf32> to vector<1x16x8xf32>
    %83 = vector.shape_cast %75 : vector<16x8xf32> to vector<1x16x8xf32>
    %84 = vector.shape_cast %76 : vector<16x8xf32> to vector<1x16x8xf32>
    %85 = tpu.concatenate %77, %78, %79, %80, %81, %82, %83, %84 in 0 : vector<1x16x8xf32>, vector<1x16x8xf32>, vector<1x16x8xf32>, vector<1x16x8xf32>, vector<1x16x8xf32>, vector<1x16x8xf32>, vector<1x16x8xf32>, vector<1x16x8xf32> -> vector<8x16x8xf32>
    "tpu.trace_start"() <{level = 10 : i32, message = "bqd,bkd->bqk"}> : () -> ()
    %cst_15 = arith.constant dense<0.000000e+00> : vector<8x16x16xf32>
    %86 = tpu.matmul %51, %68, %cst_15 {dimension_numbers = #tpu.dot_dimension_numbers<[2], [2], [1], [1], [0, 0, 0, 1, 1, 1], [0], [0]>} : vector<8x16x8xf32>, vector<8x16x8xf32>, vector<8x16x16xf32> -> vector<8x16x16xf32>
    "tpu.trace_stop"() : () -> ()
    %cst_16 = arith.constant dense<0xFF800000> : vector<8x16xf32>
    %87 = vector.multi_reduction <maximumf>, %86, %cst_16 [2] : vector<8x16x16xf32> to vector<8x16xf32>
    %88 = vector.shape_cast %87 : vector<8x16xf32> to vector<8x16x1xf32>
    %89 = vector.broadcast %88 : vector<8x16x1xf32> to vector<8x16x16xf32>
    %90 = arith.subf %86, %89 : vector<8x16x16xf32>
    %91 = math.exp %90 : vector<8x16x16xf32>
    %cst_17 = arith.constant dense<0.000000e+00> : vector<8x16xf32>
    %92 = vector.multi_reduction <add>, %91, %cst_17 [2] : vector<8x16x16xf32> to vector<8x16xf32>
    %93 = vector.shape_cast %92 : vector<8x16xf32> to vector<8x16x1xf32>
    %94 = tpu.reciprocal %93 {approx = true} : vector<8x16x1xf32> -> vector<8x16x1xf32>
    %95 = vector.broadcast %94 : vector<8x16x1xf32> to vector<8x16x16xf32>
    %96 = arith.mulf %91, %95 : vector<8x16x16xf32>
    "tpu.trace_start"() <{level = 10 : i32, message = "bqk,bkd->bqd"}> : () -> ()
    %cst_18 = arith.constant dense<0.000000e+00> : vector<8x16x8xf32>
    %97 = tpu.matmul %96, %85, %cst_18 {dimension_numbers = #tpu.dot_dimension_numbers<[2], [1], [1], [2], [0, 0, 0, 1, 1, 2], [0], [0]>} : vector<8x16x16xf32>, vector<8x16x8xf32>, vector<8x16x8xf32> -> vector<8x16x8xf32>
    "tpu.trace_stop"() : () -> ()
    %98 = vector.extract_strided_slice %97 {offsets = [0, 0, 0], sizes = [1, 16, 8], strides = [1, 1, 1]} : vector<8x16x8xf32> to vector<1x16x8xf32>
    %99 = vector.shape_cast %98 : vector<1x16x8xf32> to vector<16x8xf32>
    %100 = vector.extract_strided_slice %97 {offsets = [1, 0, 0], sizes = [1, 16, 8], strides = [1, 1, 1]} : vector<8x16x8xf32> to vector<1x16x8xf32>
    %101 = vector.shape_cast %100 : vector<1x16x8xf32> to vector<16x8xf32>
    %102 = vector.extract_strided_slice %97 {offsets = [2, 0, 0], sizes = [1, 16, 8], strides = [1, 1, 1]} : vector<8x16x8xf32> to vector<1x16x8xf32>
    %103 = vector.shape_cast %102 : vector<1x16x8xf32> to vector<16x8xf32>
    %104 = vector.extract_strided_slice %97 {offsets = [3, 0, 0], sizes = [1, 16, 8], strides = [1, 1, 1]} : vector<8x16x8xf32> to vector<1x16x8xf32>
    %105 = vector.shape_cast %104 : vector<1x16x8xf32> to vector<16x8xf32>
    %106 = tpu.concatenate %99, %101, %103, %105 in 1 : vector<16x8xf32>, vector<16x8xf32>, vector<16x8xf32>, vector<16x8xf32> -> vector<16x32xf32>
    %107 = vector.extract_strided_slice %97 {offsets = [4, 0, 0], sizes = [1, 16, 8], strides = [1, 1, 1]} : vector<8x16x8xf32> to vector<1x16x8xf32>
    %108 = vector.shape_cast %107 : vector<1x16x8xf32> to vector<16x8xf32>
    %109 = vector.extract_strided_slice %97 {offsets = [5, 0, 0], sizes = [1, 16, 8], strides = [1, 1, 1]} : vector<8x16x8xf32> to vector<1x16x8xf32>
    %110 = vector.shape_cast %109 : vector<1x16x8xf32> to vector<16x8xf32>
    %111 = vector.extract_strided_slice %97 {offsets = [6, 0, 0], sizes = [1, 16, 8], strides = [1, 1, 1]} : vector<8x16x8xf32> to vector<1x16x8xf32>
    %112 = vector.shape_cast %111 : vector<1x16x8xf32> to vector<16x8xf32>
    %113 = vector.extract_strided_slice %97 {offsets = [7, 0, 0], sizes = [1, 16, 8], strides = [1, 1, 1]} : vector<8x16x8xf32> to vector<1x16x8xf32>
    %114 = vector.shape_cast %113 : vector<1x16x8xf32> to vector<16x8xf32>
    %115 = tpu.concatenate %108, %110, %112, %114 in 1 : vector<16x8xf32>, vector<16x8xf32>, vector<16x8xf32>, vector<16x8xf32> -> vector<16x32xf32>
    %116 = tpu.concatenate %106, %115 in 0 : vector<16x32xf32>, vector<16x32xf32> -> vector<32x32xf32>
    %c0_19 = arith.constant 0 : index
    %c0_20 = arith.constant 0 : index
    %117 = vector.load %arg5[%c0_19, %c0_20] : memref<32x32xf32, #tpu.memory_space<vmem>>, vector<32x32xf32>
    %cst_21 = arith.constant dense<0.000000e+00> : vector<32x32xf32>
    %118 = tpu.matmul %116, %117, %cst_21 {dimension_numbers = #tpu.dot_dimension_numbers<[1], [0], [0], [1], [0, 0, 1, 1], [], []>} : vector<32x32xf32>, vector<32x32xf32>, vector<32x32xf32> -> vector<32x32xf32>
    %c0_22 = arith.constant 0 : index
    %c0_23 = arith.constant 0 : index
    %119 = vector.load %arg6[%c0_22, %c0_23] : memref<1x32xf32, #tpu.memory_space<vmem>>, vector<1x32xf32>
    %120 = vector.broadcast %119 : vector<1x32xf32> to vector<32x32xf32>
    %121 = arith.addf %118, %120 : vector<32x32xf32>
    %122 = arith.addf %0, %121 : vector<32x32xf32>
    %c0_24 = arith.constant 0 : index
    %c0_25 = arith.constant 0 : index
    %123 = vector.load %arg7[%c0_24, %c0_25] : memref<1x32xf32, #tpu.memory_space<vmem>>, vector<1x32xf32>
    %c0_26 = arith.constant 0 : index
    %c0_27 = arith.constant 0 : index
    %124 = vector.load %arg8[%c0_26, %c0_27] : memref<1x32xf32, #tpu.memory_space<vmem>>, vector<1x32xf32>
    %cst_28 = arith.constant dense<0.000000e+00> : vector<32xf32>
    %125 = vector.multi_reduction <add>, %122, %cst_28 [1] : vector<32x32xf32> to vector<32xf32>
    %126 = vector.shape_cast %125 : vector<32xf32> to vector<32x1xf32>
    %cst_29 = arith.constant 3.200000e+01 : f32
    %127 = vector.broadcast %cst_29 : f32 to vector<32x1xf32>
    %128 = arith.divf %126, %127 : vector<32x1xf32>
    %129 = vector.broadcast %128 : vector<32x1xf32> to vector<32x32xf32>
    %130 = arith.subf %122, %129 : vector<32x32xf32>
    %131 = arith.mulf %130, %130 : vector<32x32xf32>
    %cst_30 = arith.constant dense<0.000000e+00> : vector<32xf32>
    %132 = vector.multi_reduction <add>, %131, %cst_30 [1] : vector<32x32xf32> to vector<32xf32>
    %133 = vector.shape_cast %132 : vector<32xf32> to vector<32x1xf32>
    %cst_31 = arith.constant 3.200000e+01 : f32
    %134 = vector.broadcast %cst_31 : f32 to vector<32x1xf32>
    %135 = arith.divf %133, %134 : vector<32x1xf32>
    %136 = vector.broadcast %128 : vector<32x1xf32> to vector<32x32xf32>
    %137 = arith.subf %122, %136 : vector<32x32xf32>
    %cst_32 = arith.constant 9.99999974E-6 : f32
    %138 = vector.broadcast %cst_32 : f32 to vector<32x1xf32>
    %139 = arith.addf %135, %138 : vector<32x1xf32>
    %140 = math.rsqrt %139 : vector<32x1xf32>
    %141 = vector.broadcast %140 : vector<32x1xf32> to vector<32x32xf32>
    %142 = arith.mulf %137, %141 : vector<32x32xf32>
    %143 = vector.broadcast %123 : vector<1x32xf32> to vector<32x32xf32>
    %144 = arith.mulf %142, %143 : vector<32x32xf32>
    %145 = vector.broadcast %124 : vector<1x32xf32> to vector<32x32xf32>
    %146 = arith.addf %144, %145 : vector<32x32xf32>
    %c0_33 = arith.constant 0 : index
    %c0_34 = arith.constant 0 : index
    %147 = vector.load %arg9[%c0_33, %c0_34] : memref<32x64xf32, #tpu.memory_space<vmem>>, vector<32x64xf32>
    %cst_35 = arith.constant dense<0.000000e+00> : vector<32x64xf32>
    %148 = tpu.matmul %146, %147, %cst_35 {dimension_numbers = #tpu.dot_dimension_numbers<[1], [0], [0], [1], [0, 0, 1, 1], [], []>} : vector<32x32xf32>, vector<32x64xf32>, vector<32x64xf32> -> vector<32x64xf32>
    %c0_36 = arith.constant 0 : index
    %c0_37 = arith.constant 0 : index
    %149 = vector.load %arg10[%c0_36, %c0_37] : memref<1x64xf32, #tpu.memory_space<vmem>>, vector<1x64xf32>
    %150 = vector.broadcast %149 : vector<1x64xf32> to vector<32x64xf32>
    %151 = arith.addf %148, %150 : vector<32x64xf32>
    %cst_38 = arith.constant 5.000000e-01 : f32
    %152 = vector.broadcast %cst_38 : f32 to vector<32x64xf32>
    %153 = arith.mulf %152, %151 : vector<32x64xf32>
    %cst_39 = arith.constant 0.707106769 : f32
    %154 = vector.broadcast %cst_39 : f32 to vector<32x64xf32>
    %155 = arith.mulf %151, %154 : vector<32x64xf32>
    %cst_40 = arith.constant 0.000000e+00 : f32
    %156 = vector.broadcast %cst_40 : f32 to vector<32x64xf32>
    %157 = arith.cmpf oge, %155, %156 : vector<32x64xf32>
    %cst_41 = arith.constant 1.000000e+00 : f32
    %cst_42 = arith.constant -1.000000e+00 : f32
    %158 = vector.broadcast %cst_41 : f32 to vector<32x64xf32>
    %159 = vector.broadcast %cst_42 : f32 to vector<32x64xf32>
    %160 = arith.select %157, %158, %159 : vector<32x64xi1>, vector<32x64xf32>
    %161 = math.absf %155 : vector<32x64xf32>
    %cst_43 = arith.constant 0.327591091 : f32
    %162 = vector.broadcast %cst_43 : f32 to vector<32x64xf32>
    %163 = arith.mulf %162, %161 : vector<32x64xf32>
    %cst_44 = arith.constant 1.000000e+00 : f32
    %164 = vector.broadcast %cst_44 : f32 to vector<32x64xf32>
    %165 = arith.addf %164, %163 : vector<32x64xf32>
    %cst_45 = arith.constant 1.000000e+00 : f32
    %166 = vector.broadcast %cst_45 : f32 to vector<32x64xf32>
    %167 = arith.divf %166, %165 : vector<32x64xf32>
    %cst_46 = arith.constant 1.06140542 : f32
    %168 = vector.broadcast %cst_46 : f32 to vector<32x64xf32>
    %169 = arith.mulf %168, %167 : vector<32x64xf32>
    %cst_47 = arith.constant -1.45315206 : f32
    %170 = vector.broadcast %cst_47 : f32 to vector<32x64xf32>
    %171 = arith.addf %169, %170 : vector<32x64xf32>
    %172 = arith.mulf %171, %167 : vector<32x64xf32>
    %cst_48 = arith.constant 1.42141378 : f32
    %173 = vector.broadcast %cst_48 : f32 to vector<32x64xf32>
    %174 = arith.addf %172, %173 : vector<32x64xf32>
    %175 = arith.mulf %174, %167 : vector<32x64xf32>
    %cst_49 = arith.constant -0.284496725 : f32
    %176 = vector.broadcast %cst_49 : f32 to vector<32x64xf32>
    %177 = arith.addf %175, %176 : vector<32x64xf32>
    %178 = arith.mulf %177, %167 : vector<32x64xf32>
    %cst_50 = arith.constant 0.254829586 : f32
    %179 = vector.broadcast %cst_50 : f32 to vector<32x64xf32>
    %180 = arith.addf %178, %179 : vector<32x64xf32>
    %181 = arith.mulf %180, %167 : vector<32x64xf32>
    %cst_51 = arith.constant 0.000000e+00 : f32
    %182 = vector.broadcast %cst_51 : f32 to vector<32x64xf32>
    %183 = arith.subf %182, %161 : vector<32x64xf32>
    %184 = arith.mulf %183, %161 : vector<32x64xf32>
    %185 = math.exp %184 : vector<32x64xf32>
    %186 = arith.mulf %181, %185 : vector<32x64xf32>
    %cst_52 = arith.constant 1.000000e+00 : f32
    %187 = vector.broadcast %cst_52 : f32 to vector<32x64xf32>
    %188 = arith.subf %187, %186 : vector<32x64xf32>
    %189 = arith.mulf %160, %188 : vector<32x64xf32>
    %cst_53 = arith.constant 1.000000e+00 : f32
    %190 = vector.broadcast %cst_53 : f32 to vector<32x64xf32>
    %191 = arith.addf %190, %189 : vector<32x64xf32>
    %192 = arith.mulf %153, %191 : vector<32x64xf32>
    %c0_54 = arith.constant 0 : index
    %c0_55 = arith.constant 0 : index
    %193 = vector.load %arg11[%c0_54, %c0_55] : memref<64x32xf32, #tpu.memory_space<vmem>>, vector<64x32xf32>
    %cst_56 = arith.constant dense<0.000000e+00> : vector<32x32xf32>
    %194 = tpu.matmul %192, %193, %cst_56 {dimension_numbers = #tpu.dot_dimension_numbers<[1], [0], [0], [1], [0, 0, 1, 1], [], []>} : vector<32x64xf32>, vector<64x32xf32>, vector<32x32xf32> -> vector<32x32xf32>
    %c0_57 = arith.constant 0 : index
    %c0_58 = arith.constant 0 : index
    %195 = vector.load %arg12[%c0_57, %c0_58] : memref<1x32xf32, #tpu.memory_space<vmem>>, vector<1x32xf32>
    %196 = vector.broadcast %195 : vector<1x32xf32> to vector<32x32xf32>
    %197 = arith.addf %194, %196 : vector<32x32xf32>
    %198 = arith.addf %197, %122 : vector<32x32xf32>
    %c0_59 = arith.constant 0 : index
    %c0_60 = arith.constant 0 : index
    %199 = vector.load %arg13[%c0_59, %c0_60] : memref<32x32xf32, #tpu.memory_space<vmem>>, vector<32x32xf32>
    tpu.vector_store %arg13[%c0_59, %c0_60], %198 {strides = array<i32>} : memref<32x32xf32, #tpu.memory_space<vmem>>, vector<32x32xf32>,
    return
  }
}

</mosaic_0001>

<llo_original>
// kernel: vit_encoder_layer.1
$region0: #{vit_encoder_layer.1}
  #allocation0 [shape = 'u32[]', space=smem, size = 0x4, offset = 0x4, fixed_abs, tag = 'smem constant byte address 0x4 - core index']
  #allocation1 [shape = 'u32[144,128]{1,0:T(1,128)}', space=vmem, size = 0x12000, scoped, tag = 'internal scratch']
  %s0 = inlined_call_operand.vmem [shape: f32[32,32], index: 0, kind: input, shape index: {}]
  %s1 = inlined_call_operand.vmem [shape: f32[1,32], index: 1, kind: input, shape index: {}]
  %s2 = inlined_call_operand.vmem [shape: f32[1,32], index: 2, kind: input, shape index: {}]
  %s3 = inlined_call_operand.vmem [shape: f32[32,96], index: 3, kind: input, shape index: {}]
  %s4 = inlined_call_operand.vmem [shape: f32[1,96], index: 4, kind: input, shape index: {}]
  %s5 = inlined_call_operand.vmem [shape: f32[32,32], index: 5, kind: input, shape index: {}]
  %s6 = inlined_call_operand.vmem [shape: f32[1,32], index: 6, kind: input, shape index: {}]
  %s7 = inlined_call_operand.vmem [shape: f32[1,32], index: 7, kind: input, shape index: {}]
  %s8 = inlined_call_operand.vmem [shape: f32[1,32], index: 8, kind: input, shape index: {}]
  %s9 = inlined_call_operand.hbm [shape: f32[32,64], index: 9, kind: input, shape index: {}]
  %s10 = inlined_call_operand.hbm [shape: f32[1,64], index: 10, kind: input, shape index: {}]
  %s11 = inlined_call_operand.vmem [shape: f32[64,32], index: 11, kind: input, shape index: {}]
  %s12 = inlined_call_operand.hbm [shape: f32[1,32], index: 12, kind: input, shape index: {}]
  %s13 = inlined_call_operand.hbm [shape: f32[32,32], index: 13, kind: output, shape index: {}]
  %s14 = sld [smem:[#allocation0]]
  $region74: #{vit_encoder_layer.1} parent=0
    _
  %s16 = ssub.s32 1, %s14
  %s17 = scalar_select 0, %s16, %s14
  $region1: #{vit_encoder_layer.1} parent=0
    #allocation2 [shape = 'u8[16384]{0}', space=vmem, size = 0x4000, scoped, tag = 'input window, operand 9, single buffered']
    #allocation3 [shape = 's32[1]{0}', space=sflag, size = 0x4, scoped, tag = 'scoped memory for vit_encoder_layer.1']
    #allocation4 [shape = 's32[1]{0}', space=sflag, size = 0x4, scoped, tag = 'scoped memory for vit_encoder_layer.1']
    #allocation5 [shape = 'u8[512]{0}', space=vmem, size = 0x400, scoped, tag = 'input window, operand 10, single buffered']
    #allocation6 [shape = 's32[1]{0}', space=sflag, size = 0x4, scoped, tag = 'scoped memory for vit_encoder_layer.1']
    #allocation7 [shape = 'u8[512]{0}', space=vmem, size = 0x400, scoped, tag = 'input window, operand 12, single buffered']
    #allocation8 [shape = 'u8[16384]{0}', space=vmem, size = 0x4000, scoped, tag = 'output window, operand 0, single buffered']
    %18 = vsyncpa [#allocation3], 0
    %19 = vsyncpa [#allocation6], 0
    %20 = vsyncpa [#allocation4], 0
    // Predicated region
    $region2: #{vit_encoder_layer.1} parent=1 // pred_check
      _
    $region3: #{vit_encoder_layer.1} parent=1 // pred_check_branch
      %22 = sbr.rel (0) target = $region5
    $region4: #{vit_encoder_layer.1} parent=1 // pred_region
      _
    $region5: #{vit_encoder_layer.1} parent=1 // pred_fallthru
      _
    // Predicated region
    $region6: #{vit_encoder_layer.1} parent=1 // pred_check
      _
    $region7: #{vit_encoder_layer.1} parent=1 // pred_check_branch
      %24 = sbr.rel (0) target = $region9
    $region8: #{vit_encoder_layer.1} parent=1 // pred_region
      _
    $region9: #{vit_encoder_layer.1} parent=1 // pred_fallthru
      _
    // Predicated region
    $region10: #{vit_encoder_layer.1} parent=1 // pred_check
      _
    $region11: #{vit_encoder_layer.1} parent=1 // pred_check_branch
      %26 = sbr.rel (0) target = $region13
    $region12: #{vit_encoder_layer.1} parent=1 // pred_region
      _
    $region13: #{vit_encoder_layer.1} parent=1 // pred_fallthru
      _
    // Predicated region
    $region14: #{vit_encoder_layer.1} parent=1 // pred_check
      _
    $region15: #{vit_encoder_layer.1} parent=1 // pred_check_branch
      %28 = sbr.rel (0) target = $region17
    $region16: #{vit_encoder_layer.1} parent=1 // pred_region
      _
    $region17: #{vit_encoder_layer.1} parent=1 // pred_fallthru
      _
    // Predicated region
    $region18: #{vit_encoder_layer.1} parent=1 // pred_check
      _
    $region19: #{vit_encoder_layer.1} parent=1 // pred_check_branch
      %30 = sbr.rel (0) target = $region21
    $region20: #{vit_encoder_layer.1} parent=1 // pred_region
      _
    $region21: #{vit_encoder_layer.1} parent=1 // pred_fallthru
      _
    // Predicated region
    $region22: #{vit_encoder_layer.1} parent=1 // pred_check
      _
    $region23: #{vit_encoder_layer.1} parent=1 // pred_check_branch
      %32 = sbr.rel (0) target = $region25
    $region24: #{vit_encoder_layer.1} parent=1 // pred_region
      _
    $region25: #{vit_encoder_layer.1} parent=1 // pred_fallthru
      _
    // Predicated region
    $region26: #{vit_encoder_layer.1} parent=1 // pred_check
      _
    $region27: #{vit_encoder_layer.1} parent=1 // pred_check_branch
      %34 = sbr.rel (0) target = $region29
    $region28: #{vit_encoder_layer.1} parent=1 // pred_region
      _
    $region29: #{vit_encoder_layer.1} parent=1 // pred_fallthru
      _
    // Predicated region
    $region30: #{vit_encoder_layer.1} parent=1 // pred_check
      _
    $region31: #{vit_encoder_layer.1} parent=1 // pred_check_branch
      %36 = sbr.rel (0) target = $region33
    $region32: #{vit_encoder_layer.1} parent=1 // pred_region
      _
    $region33: #{vit_encoder_layer.1} parent=1 // pred_fallthru
      _
    // Predicated region
    $region34: #{vit_encoder_layer.1} parent=1 // pred_check
      _
    $region35: #{vit_encoder_layer.1} parent=1 // pred_check_branch
      %38 = sbr.rel (0) target = $region37
    $region36: #{vit_encoder_layer.1} parent=1 // pred_region
      _
    $region37: #{vit_encoder_layer.1} parent=1 // pred_fallthru
      _
    // Predicated region
    $region38: #{vit_encoder_layer.1} parent=1 // pred_check
      _
    $region39: #{vit_encoder_layer.1} parent=1 // pred_check_branch
      %40 = sbr.rel (0) target = $region41
    $region40: #{vit_encoder_layer.1} parent=1 // pred_region
      %s42 = ssub.s32 512, 512
      %43 = vsyncadd [#allocation3], %s42
      %s44 = sshll.u32 [#allocation2], 4
      %s45 = int_to_ptr.vmem [resolvable:$true] %s44
      %50 = dma.hbm_to_vmem [thread:$0]  %s9, 512, %s45, [#allocation3], 128, 128, 8
    $region41: #{vit_encoder_layer.1} parent=1 // pred_fallthru
      _
    // Predicated region
    $region42: #{vit_encoder_layer.1} parent=1 // pred_check
      _
    $region43: #{vit_encoder_layer.1} parent=1 // pred_check_branch
      %52 = sbr.rel (0) target = $region45
    $region44: #{vit_encoder_layer.1} parent=1 // pred_region
      %s54 = ssub.s32 16, 16
      %55 = vsyncadd [#allocation6], %s54
      %s57 = sshll.u32 [#allocation5], 4
      %s58 = int_to_ptr.vmem [resolvable:$true] %s57
      %60 = dma.hbm_to_vmem [thread:$0]  %s10, 16, %s58, [#allocation6]
    $region45: #{vit_encoder_layer.1} parent=1 // pred_fallthru
      _
    // Predicated region
    $region46: #{vit_encoder_layer.1} parent=1 // pred_check
      _
    $region47: #{vit_encoder_layer.1} parent=1 // pred_check_branch
      %62 = sbr.rel (0) target = $region49
    $region48: #{vit_encoder_layer.1} parent=1 // pred_region
      _
    $region49: #{vit_encoder_layer.1} parent=1 // pred_fallthru
      _
    // Predicated region
    $region50: #{vit_encoder_layer.1} parent=1 // pred_check
      _
    $region51: #{vit_encoder_layer.1} parent=1 // pred_check_branch
      %64 = sbr.rel (0) target = $region53
    $region52: #{vit_encoder_layer.1} parent=1 // pred_region
      %s66 = ssub.s32 16, 16
      %67 = vsyncadd [#allocation6], %s66
      %s69 = sshll.u32 [#allocation7], 4
      %s70 = int_to_ptr.vmem [resolvable:$true] %s69
      %72 = dma.hbm_to_vmem [thread:$0]  %s12, 16, %s70, [#allocation6]
    $region53: #{vit_encoder_layer.1} parent=1 // pred_fallthru
      _
    // Predicated region
    $region54: #{vit_encoder_layer.1} parent=1 // pred_check
      _
    $region55: #{vit_encoder_layer.1} parent=1 // pred_check_branch
      %74 = sbr.rel (0) target = $region57
    $region56: #{vit_encoder_layer.1} parent=1 // pred_region
      %75 = dma.done [#allocation3], 512
    $region57: #{vit_encoder_layer.1} parent=1 // pred_fallthru
      _
    // Predicated region
    $region58: #{vit_encoder_layer.1} parent=1 // pred_check
      _
    $region59: #{vit_encoder_layer.1} parent=1 // pred_check_branch
      %77 = sbr.rel (0) target = $region61
    $region60: #{vit_encoder_layer.1} parent=1 // pred_region
      %78 = dma.done [#allocation6], 16
    $region61: #{vit_encoder_layer.1} parent=1 // pred_fallthru
      _
    // Predicated region
    $region62: #{vit_encoder_layer.1} parent=1 // pred_check
      _
    $region63: #{vit_encoder_layer.1} parent=1 // pred_check_branch
      %80 = sbr.rel (0) target = $region65
    $region64: #{vit_encoder_layer.1} parent=1 // pred_region
      %81 = dma.done [#allocation6], 16
    $region65: #{vit_encoder_layer.1} parent=1 // pred_fallthru
      _
    %v82 = vld [vmem:[%s0] sm:$0xff]
    %v83 = vld [vmem:[%s0 + $0x8] sm:$0xff]
    %v84 = vld [vmem:[%s0 + $0x10] sm:$0xff]
    %v85 = vld [vmem:[%s0 + $0x18] sm:$0xff]
    %v86 = vld [vmem:[%s1] sm:$0x1]
    %v87 = vld [vmem:[%s2] sm:$0x1]
    %vm88 = vcmask 261120
    %v89 = vsel %vm88, %v82, 0.0
    %90 = vadd.xlane.f32.xlu0 %v89
    %v91 = vpop.xlane.xlu0 %90
    %v92 = vsel %vm88, %v83, 0.0
    %93 = vadd.xlane.f32.xlu0 %v92
    %v94 = vpop.xlane.xlu0 %93
    %v95 = vsel %vm88, %v84, 0.0
    %96 = vadd.xlane.f32.xlu0 %v95
    %v97 = vpop.xlane.xlu0 %96
    %v98 = vsel %vm88, %v85, 0.0
    %99 = vadd.xlane.f32.xlu0 %v98
    %v100 = vpop.xlane.xlu0 %99
    %v101 = vrcp.pop 32.0
    %v102 = vmul.f32 %v91, %v101
    %v103 = vmul.f32 %v94, %v101
    %v104 = vmul.f32 %v97, %v101
    %v105 = vmul.f32 %v100, %v101
    %v106 = vsub.f32 %v82, %v102
    %v107 = vsub.f32 %v83, %v103
    %v108 = vsub.f32 %v84, %v104
    %v109 = vsub.f32 %v85, %v105
    %v110 = vmul.f32 %v106, %v106
    %v111 = vmul.f32 %v107, %v107
    %v112 = vmul.f32 %v108, %v108
    %v113 = vmul.f32 %v109, %v109
    %v114 = vsel %vm88, %v110, 0.0
    %115 = vadd.xlane.f32.xlu0 %v114
    %v116 = vpop.xlane.xlu0 %115
    %v117 = vsel %vm88, %v111, 0.0
    %118 = vadd.xlane.f32.xlu0 %v117
    %v119 = vpop.xlane.xlu0 %118
    %v120 = vsel %vm88, %v112, 0.0
    %121 = vadd.xlane.f32.xlu0 %v120
    %v122 = vpop.xlane.xlu0 %121
    %v123 = vsel %vm88, %v113, 0.0
    %124 = vadd.xlane.f32.xlu0 %v123
    %v125 = vpop.xlane.xlu0 %124
    %v126 = vmul.f32 %v116, %v101
    %v127 = vmul.f32 %v119, %v101
    %v128 = vmul.f32 %v122, %v101
    %v129 = vmul.f32 %v125, %v101
    %v130 = vadd.f32 %v126, 1e-05
    %v131 = vadd.f32 %v127, 1e-05
    %v132 = vadd.f32 %v128, 1e-05
    %v133 = vadd.f32 %v129, 1e-05
    %v134 = vrsqrt.pop %v130
    %v135 = vrsqrt.pop %v131
    %v136 = vrsqrt.pop %v132
    %v137 = vrsqrt.pop %v133
    %v138 = vmul.f32 %v106, %v134
    %v139 = vmul.f32 %v107, %v135
    %v140 = vmul.f32 %v108, %v136
    %v141 = vmul.f32 %v109, %v137
    %v143 = vlaneseq
    %v144 = vshrl.u32 %v143, 7
    %v145 = vsub.s32 0, %v144
    %v146 = vrot.slane %v86, %v145
    %v148 = vmul.f32 %v138, %v146
    %v149 = vmul.f32 %v139, %v146
    %v150 = vmul.f32 %v140, %v146
    %v151 = vmul.f32 %v141, %v146
    %v153 = vlaneseq
    %v154 = vshrl.u32 %v153, 7
    %v155 = vsub.s32 0, %v154
    %v156 = vrot.slane %v87, %v155
    %v158 = vadd.f32 %v148, %v156
    %v159 = vadd.f32 %v149, %v156
    %v160 = vadd.f32 %v150, %v156
    %v161 = vadd.f32 %v151, %v156
    %v162 = vld [vmem:[%s3] sm:$0xff]
    %v163 = vld [vmem:[%s3 + $0x8] sm:$0xff]
    %v164 = vld [vmem:[%s3 + $0x10] sm:$0xff]
    %v165 = vld [vmem:[%s3 + $0x18] sm:$0xff]
    %v166 = vld [vmem:[%s4] sm:$0x1]
    %v168 = vlaneseq
    %v169 = vshrl.u32 %v168, 7
    %v170 = vsub.s32 0, %v169
    %v171 = vrot.slane %v166, %v170
    %v174 = vsel %vm88, %v158, 0
    %v177 = vsel %vm88, %v159, 0
    %v180 = vsel %vm88, %v160, 0
    %v183 = vsel %vm88, %v161, 0
    %185 = vmatprep.subr.mxu0 0.0
    %186 = vmatpush1.msra.mxu0 0.0
    %187 = vmatprep.subr.mxu0 0.0
    %188 = vmatpush1.msra.mxu0 0.0
    %189 = vmatprep.subr.mxu0 0.0
    %190 = vmatpush1.msra.mxu0 0.0
    %191 = vmatprep.subr.mxu0 0.0
    %192 = vmatpush1.msra.mxu0 0.0
    %193 = vmatprep.subr.mxu0 0.0
    %194 = vmatpush1.msra.mxu0 0.0
    %195 = vmatprep.subr.mxu0 0.0
    %196 = vmatpush1.msra.mxu0 0.0
    %197 = vmatprep.subr.mxu0 0.0
    %198 = vmatpush1.msra.mxu0 0.0
    %199 = vmatprep.subr.mxu0 0.0
    %200 = vmatpush1.msra.mxu0 0.0
    %201 = vmatprep.subr.mxu0 0.0
    %202 = vmatpush1.msra.mxu0 0.0
    %203 = vmatprep.subr.mxu0 0.0
    %204 = vmatpush1.msra.mxu0 0.0
    %205 = vmatprep.subr.mxu0 0.0
    %206 = vmatpush1.msra.mxu0 0.0
    %207 = vmatprep.subr.mxu0 0.0
    %208 = vmatpush1.msra.mxu0 0.0
    %209 = vmatprep.subr.mxu0 0.0
    %210 = vmatpush1.msra.mxu0 %v165
    %211 = vmatprep.subr.mxu0 0.0
    %212 = vmatpush1.msra.mxu0 %v164
    %213 = vmatprep.subr.mxu0 0.0
    %214 = vmatpush1.msra.mxu0 %v163
    %215 = vmatprep.subr.mxu0 0.0
    %216 = vmatpush1.msra.mxu0 %v162
    %217 = vmatprep.subr.mxu0 0.0
    %218 = vmatpush2.msra.mxu0 0.0
    %219 = vmatprep.subr.mxu0 0.0
    %220 = vmatpush2.msra.mxu0 0.0
    %221 = vmatprep.subr.mxu0 0.0
    %222 = vmatpush2.msra.mxu0 0.0
    %223 = vmatprep.subr.mxu0 0.0
    %224 = vmatpush2.msra.mxu0 0.0
    %225 = vmatprep.subr.mxu0 0.0
    %226 = vmatpush2.msra.mxu0 0.0
    %227 = vmatprep.subr.mxu0 0.0
    %228 = vmatpush2.msra.mxu0 0.0
    %229 = vmatprep.subr.mxu0 0.0
    %230 = vmatpush2.msra.mxu0 0.0
    %231 = vmatprep.subr.mxu0 0.0
    %232 = vmatpush2.msra.mxu0 0.0
    %233 = vmatprep.subr.mxu0 0.0
    %234 = vmatpush2.msra.mxu0 0.0
    %235 = vmatprep.subr.mxu0 0.0
    %236 = vmatpush2.msra.mxu0 0.0
    %237 = vmatprep.subr.mxu0 0.0
    %238 = vmatpush2.msra.mxu0 0.0
    %239 = vmatprep.subr.mxu0 0.0
    %240 = vmatpush2.msra.mxu0 0.0
    %241 = vmatprep.subr.mxu0 0.0
    %242 = vmatpush2.msra.mxu0 0.0
    %243 = vmatprep.subr.mxu0 0.0
    %244 = vmatpush2.msra.mxu0 0.0
    %245 = vmatprep.subr.mxu0 0.0
    %246 = vmatpush2.msra.mxu0 0.0
    %247 = vmatprep.subr.mxu0 0.0
    %248 = vmatpush2.msra.mxu0 0.0
    %249 = vmatprep.mubr.f32.mxu0 0.0
    %250 = vmatmul.mubr.f32.gmra.mxu0 %v174
    %v251 = vpop.f32.mrf.mxu0
    %v252 = vadd.f32 %v171, %v251
    %v253 = vpop.f32.mrf.mxu0
    %254 = vmatprep.mubr.f32.mxu0 0.0
    %255 = vmatmul.mubr.f32.gmra.mxu0 %v177
    %v256 = vpop.f32.mrf.mxu0
    %v257 = vadd.f32 %v171, %v256
    %v258 = vpop.f32.mrf.mxu0
    %259 = vmatprep.mubr.f32.mxu0 0.0
    %260 = vmatmul.mubr.f32.gmra.mxu0 %v180
    %v261 = vpop.f32.mrf.mxu0
    %v262 = vadd.f32 %v171, %v261
    %v263 = vpop.f32.mrf.mxu0
    %264 = vmatprep.mubr.f32.mxu0 0.0
    %265 = vmatmul.mubr.f32.gmra.mxu0 %v183
    %v266 = vpop.f32.mrf.mxu0
    %v267 = vadd.f32 %v171, %v266
    %v268 = vpop.f32.mrf.mxu0
    %269 = vdwg.mxu0
    %272 = vrot.lane.b32.xlu0 %v252, 120
    %v273 = vpop.permute.xlu0 %272
    %274 = vrot.lane.b32.xlu0 %v257, 120
    %v275 = vpop.permute.xlu0 %274
    %278 = vrot.lane.b32.xlu0 %v252, 112
    %v279 = vpop.permute.xlu0 %278
    %280 = vrot.lane.b32.xlu0 %v257, 112
    %v281 = vpop.permute.xlu0 %280
    %284 = vrot.lane.b32.xlu0 %v252, 104
    %v285 = vpop.permute.xlu0 %284
    %286 = vrot.lane.b32.xlu0 %v257, 104
    %v287 = vpop.permute.xlu0 %286
    %292 = vrot.lane.b32.xlu0 %v262, 120
    %v293 = vpop.permute.xlu0 %292
    %294 = vrot.lane.b32.xlu0 %v267, 120
    %v295 = vpop.permute.xlu0 %294
    %298 = vrot.lane.b32.xlu0 %v262, 112
    %v299 = vpop.permute.xlu0 %298
    %300 = vrot.lane.b32.xlu0 %v267, 112
    %v301 = vpop.permute.xlu0 %300
    %304 = vrot.lane.b32.xlu0 %v262, 104
    %v305 = vpop.permute.xlu0 %304
    %306 = vrot.lane.b32.xlu0 %v267, 104
    %v307 = vpop.permute.xlu0 %306
    %v310 = vmul.f32 %v252, 0.35355338
    %v311 = vmul.f32 %v257, 0.35355338
    %v312 = vmul.f32 %v273, 0.35355338
    %v313 = vmul.f32 %v275, 0.35355338
    %v314 = vmul.f32 %v279, 0.35355338
    %v315 = vmul.f32 %v281, 0.35355338
    %v316 = vmul.f32 %v285, 0.35355338
    %v317 = vmul.f32 %v287, 0.35355338
    %v318 = vmul.f32 %v262, 0.35355338
    %v319 = vmul.f32 %v267, 0.35355338
    %v320 = vmul.f32 %v293, 0.35355338
    %v321 = vmul.f32 %v295, 0.35355338
    %v322 = vmul.f32 %v299, 0.35355338
    %v323 = vmul.f32 %v301, 0.35355338
    %v324 = vmul.f32 %v305, 0.35355338
    %v325 = vmul.f32 %v307, 0.35355338
    %326 = vrot.lane.b32.xlu0 %v252, 96
    %v327 = vpop.permute.xlu0 %326
    %328 = vrot.lane.b32.xlu0 %v257, 96
    %v329 = vpop.permute.xlu0 %328
    %vm330 = vcmask 64512
    %v332 = vsel %vm330, %v310, 0
    %v335 = vsel %vm330, %v311, 0
    %v337 = vsel %vm330, %v327, 0
    %v339 = vsel %vm330, %v329, 0
    %341 = vmatprep.subr.mxu0 0.0
    %342 = vmatpush1.xpose.msra.mxu0 0.0
    %343 = vmatprep.subr.mxu0 0.0
    %344 = vmatpush1.xpose.msra.mxu0 0.0
    %345 = vmatprep.subr.mxu0 0.0
    %346 = vmatpush1.xpose.msra.mxu0 0.0
    %347 = vmatprep.subr.mxu0 0.0
    %348 = vmatpush1.xpose.msra.mxu0 0.0
    %349 = vmatprep.subr.mxu0 0.0
    %350 = vmatpush1.xpose.msra.mxu0 0.0
    %351 = vmatprep.subr.mxu0 0.0
    %352 = vmatpush1.xpose.msra.mxu0 0.0
    %353 = vmatprep.subr.mxu0 0.0
    %354 = vmatpush1.xpose.msra.mxu0 0.0
    %355 = vmatprep.subr.mxu0 0.0
    %356 = vmatpush1.xpose.msra.mxu0 0.0
    %357 = vmatprep.subr.mxu0 0.0
    %358 = vmatpush1.xpose.msra.mxu0 0.0
    %359 = vmatprep.subr.mxu0 0.0
    %360 = vmatpush1.xpose.msra.mxu0 0.0
    %361 = vmatprep.subr.mxu0 0.0
    %362 = vmatpush1.xpose.msra.mxu0 0.0
    %363 = vmatprep.subr.mxu0 0.0
    %364 = vmatpush1.xpose.msra.mxu0 0.0
    %365 = vmatprep.subr.mxu0 0.0
    %366 = vmatpush1.xpose.msra.mxu0 0.0
    %367 = vmatprep.subr.mxu0 0.0
    %368 = vmatpush1.xpose.msra.mxu0 0.0
    %369 = vmatprep.subr.mxu0 0.0
    %370 = vmatpush1.xpose.msra.mxu0 %v339
    %371 = vmatprep.subr.mxu0 0.0
    %372 = vmatpush1.xpose.msra.mxu0 %v337
    %373 = vmatprep.subr.mxu0 0.0
    %374 = vmatpush2.xpose.msra.mxu0 0.0
    %375 = vmatprep.subr.mxu0 0.0
    %376 = vmatpush2.xpose.msra.mxu0 0.0
    %377 = vmatprep.subr.mxu0 0.0
    %378 = vmatpush2.xpose.msra.mxu0 0.0
    %379 = vmatprep.subr.mxu0 0.0
    %380 = vmatpush2.xpose.msra.mxu0 0.0
    %381 = vmatprep.subr.mxu0 0.0
    %382 = vmatpush2.xpose.msra.mxu0 0.0
    %383 = vmatprep.subr.mxu0 0.0
    %384 = vmatpush2.xpose.msra.mxu0 0.0
    %385 = vmatprep.subr.mxu0 0.0
    %386 = vmatpush2.xpose.msra.mxu0 0.0
    %387 = vmatprep.subr.mxu0 0.0
    %388 = vmatpush2.xpose.msra.mxu0 0.0
    %389 = vmatprep.subr.mxu0 0.0
    %390 = vmatpush2.xpose.msra.mxu0 0.0
    %391 = vmatprep.subr.mxu0 0.0
    %392 = vmatpush2.xpose.msra.mxu0 0.0
    %393 = vmatprep.subr.mxu0 0.0
    %394 = vmatpush2.xpose.msra.mxu0 0.0
    %395 = vmatprep.subr.mxu0 0.0
    %396 = vmatpush2.xpose.msra.mxu0 0.0
    %397 = vmatprep.subr.mxu0 0.0
    %398 = vmatpush2.xpose.msra.mxu0 0.0
    %399 = vmatprep.subr.mxu0 0.0
    %400 = vmatpush2.xpose.msra.mxu0 0.0
    %401 = vmatprep.subr.mxu0 0.0
    %402 = vmatpush2.xpose.msra.mxu0 0.0
    %403 = vmatprep.subr.mxu0 0.0
    %404 = vmatpush2.xpose.msra.mxu0 0.0
    %405 = vmatprep.mubr.f32.mxu0 0.0
    %406 = vmatmul.mubr.f32.gmra.mxu0 %v332
    %v407 = vpop.f32.mrf.mxu0
    %v408 = vadd.f32 0.0, %v407
    %v409 = vpop.f32.mrf.mxu0
    %410 = vmatprep.mubr.f32.mxu0 0.0
    %411 = vmatmul.mubr.f32.gmra.mxu0 %v335
    %v412 = vpop.f32.mrf.mxu0
    %v413 = vadd.f32 0.0, %v412
    %v414 = vpop.f32.mrf.mxu0
    %415 = vdwg.mxu0
    %416 = vrot.lane.b32.xlu0 %v273, 96
    %v417 = vpop.permute.xlu0 %416
    %418 = vrot.lane.b32.xlu0 %v275, 96
    %v419 = vpop.permute.xlu0 %418
    %v421 = vsel %vm330, %v312, 0
    %v424 = vsel %vm330, %v313, 0
    %v426 = vsel %vm330, %v417, 0
    %v428 = vsel %vm330, %v419, 0
    %430 = vmatprep.subr.mxu0 0.0
    %431 = vmatpush1.xpose.msra.mxu0 0.0
    %432 = vmatprep.subr.mxu0 0.0
    %433 = vmatpush1.xpose.msra.mxu0 0.0
    %434 = vmatprep.subr.mxu0 0.0
    %435 = vmatpush1.xpose.msra.mxu0 0.0
    %436 = vmatprep.subr.mxu0 0.0
    %437 = vmatpush1.xpose.msra.mxu0 0.0
    %438 = vmatprep.subr.mxu0 0.0
    %439 = vmatpush1.xpose.msra.mxu0 0.0
    %440 = vmatprep.subr.mxu0 0.0
    %441 = vmatpush1.xpose.msra.mxu0 0.0
    %442 = vmatprep.subr.mxu0 0.0
    %443 = vmatpush1.xpose.msra.mxu0 0.0
    %444 = vmatprep.subr.mxu0 0.0
    %445 = vmatpush1.xpose.msra.mxu0 0.0
    %446 = vmatprep.subr.mxu0 0.0
    %447 = vmatpush1.xpose.msra.mxu0 0.0
    %448 = vmatprep.subr.mxu0 0.0
    %449 = vmatpush1.xpose.msra.mxu0 0.0
    %450 = vmatprep.subr.mxu0 0.0
    %451 = vmatpush1.xpose.msra.mxu0 0.0
    %452 = vmatprep.subr.mxu0 0.0
    %453 = vmatpush1.xpose.msra.mxu0 0.0
    %454 = vmatprep.subr.mxu0 0.0
    %455 = vmatpush1.xpose.msra.mxu0 0.0
    %456 = vmatprep.subr.mxu0 0.0
    %457 = vmatpush1.xpose.msra.mxu0 0.0
    %458 = vmatprep.subr.mxu0 0.0
    %459 = vmatpush1.xpose.msra.mxu0 %v428
    %460 = vmatprep.subr.mxu0 0.0
    %461 = vmatpush1.xpose.msra.mxu0 %v426
    %462 = vmatprep.subr.mxu0 0.0
    %463 = vmatpush2.xpose.msra.mxu0 0.0
    %464 = vmatprep.subr.mxu0 0.0
    %465 = vmatpush2.xpose.msra.mxu0 0.0
    %466 = vmatprep.subr.mxu0 0.0
    %467 = vmatpush2.xpose.msra.mxu0 0.0
    %468 = vmatprep.subr.mxu0 0.0
    %469 = vmatpush2.xpose.msra.mxu0 0.0
    %470 = vmatprep.subr.mxu0 0.0
    %471 = vmatpush2.xpose.msra.mxu0 0.0
    %472 = vmatprep.subr.mxu0 0.0
    %473 = vmatpush2.xpose.msra.mxu0 0.0
    %474 = vmatprep.subr.mxu0 0.0
    %475 = vmatpush2.xpose.msra.mxu0 0.0
    %476 = vmatprep.subr.mxu0 0.0
    %477 = vmatpush2.xpose.msra.mxu0 0.0
    %478 = vmatprep.subr.mxu0 0.0
    %479 = vmatpush2.xpose.msra.mxu0 0.0
    %480 = vmatprep.subr.mxu0 0.0
    %481 = vmatpush2.xpose.msra.mxu0 0.0
    %482 = vmatprep.subr.mxu0 0.0
    %483 = vmatpush2.xpose.msra.mxu0 0.0
    %484 = vmatprep.subr.mxu0 0.0
    %485 = vmatpush2.xpose.msra.mxu0 0.0
    %486 = vmatprep.subr.mxu0 0.0
    %487 = vmatpush2.xpose.msra.mxu0 0.0
    %488 = vmatprep.subr.mxu0 0.0
    %489 = vmatpush2.xpose.msra.mxu0 0.0
    %490 = vmatprep.subr.mxu0 0.0
    %491 = vmatpush2.xpose.msra.mxu0 0.0
    %492 = vmatprep.subr.mxu0 0.0
    %493 = vmatpush2.xpose.msra.mxu0 0.0
    %494 = vmatprep.mubr.f32.mxu0 0.0
    %495 = vmatmul.mubr.f32.gmra.mxu0 %v421
    %v496 = vpop.f32.mrf.mxu0
    %v497 = vadd.f32 0.0, %v496
    %v498 = vpop.f32.mrf.mxu0
    %499 = vmatprep.mubr.f32.mxu0 0.0
    %500 = vmatmul.mubr.f32.gmra.mxu0 %v424
    %v501 = vpop.f32.mrf.mxu0
    %v502 = vadd.f32 0.0, %v501
    %v503 = vpop.f32.mrf.mxu0
    %504 = vdwg.mxu0
    %505 = vrot.lane.b32.xlu0 %v279, 96
    %v506 = vpop.permute.xlu0 %505
    %507 = vrot.lane.b32.xlu0 %v281, 96
    %v508 = vpop.permute.xlu0 %507
    %v510 = vsel %vm330, %v314, 0
    %v513 = vsel %vm330, %v315, 0
    %v515 = vsel %vm330, %v506, 0
    %v517 = vsel %vm330, %v508, 0
    %519 = vmatprep.subr.mxu0 0.0
    %520 = vmatpush1.xpose.msra.mxu0 0.0
    %521 = vmatprep.subr.mxu0 0.0
    %522 = vmatpush1.xpose.msra.mxu0 0.0
    %523 = vmatprep.subr.mxu0 0.0
    %524 = vmatpush1.xpose.msra.mxu0 0.0
    %525 = vmatprep.subr.mxu0 0.0
    %526 = vmatpush1.xpose.msra.mxu0 0.0
    %527 = vmatprep.subr.mxu0 0.0
    %528 = vmatpush1.xpose.msra.mxu0 0.0
    %529 = vmatprep.subr.mxu0 0.0
    %530 = vmatpush1.xpose.msra.mxu0 0.0
    %531 = vmatprep.subr.mxu0 0.0
    %532 = vmatpush1.xpose.msra.mxu0 0.0
    %533 = vmatprep.subr.mxu0 0.0
    %534 = vmatpush1.xpose.msra.mxu0 0.0
    %535 = vmatprep.subr.mxu0 0.0
    %536 = vmatpush1.xpose.msra.mxu0 0.0
    %537 = vmatprep.subr.mxu0 0.0
    %538 = vmatpush1.xpose.msra.mxu0 0.0
    %539 = vmatprep.subr.mxu0 0.0
    %540 = vmatpush1.xpose.msra.mxu0 0.0
    %541 = vmatprep.subr.mxu0 0.0
    %542 = vmatpush1.xpose.msra.mxu0 0.0
    %543 = vmatprep.subr.mxu0 0.0
    %544 = vmatpush1.xpose.msra.mxu0 0.0
    %545 = vmatprep.subr.mxu0 0.0
    %546 = vmatpush1.xpose.msra.mxu0 0.0
    %547 = vmatprep.subr.mxu0 0.0
    %548 = vmatpush1.xpose.msra.mxu0 %v517
    %549 = vmatprep.subr.mxu0 0.0
    %550 = vmatpush1.xpose.msra.mxu0 %v515
    %551 = vmatprep.subr.mxu0 0.0
    %552 = vmatpush2.xpose.msra.mxu0 0.0
    %553 = vmatprep.subr.mxu0 0.0
    %554 = vmatpush2.xpose.msra.mxu0 0.0
    %555 = vmatprep.subr.mxu0 0.0
    %556 = vmatpush2.xpose.msra.mxu0 0.0
    %557 = vmatprep.subr.mxu0 0.0
    %558 = vmatpush2.xpose.msra.mxu0 0.0
    %559 = vmatprep.subr.mxu0 0.0
    %560 = vmatpush2.xpose.msra.mxu0 0.0
    %561 = vmatprep.subr.mxu0 0.0
    %562 = vmatpush2.xpose.msra.mxu0 0.0
    %563 = vmatprep.subr.mxu0 0.0
    %564 = vmatpush2.xpose.msra.mxu0 0.0
    %565 = vmatprep.subr.mxu0 0.0
    %566 = vmatpush2.xpose.msra.mxu0 0.0
    %567 = vmatprep.subr.mxu0 0.0
    %568 = vmatpush2.xpose.msra.mxu0 0.0
    %569 = vmatprep.subr.mxu0 0.0
    %570 = vmatpush2.xpose.msra.mxu0 0.0
    %571 = vmatprep.subr.mxu0 0.0
    %572 = vmatpush2.xpose.msra.mxu0 0.0
    %573 = vmatprep.subr.mxu0 0.0
    %574 = vmatpush2.xpose.msra.mxu0 0.0
    %575 = vmatprep.subr.mxu0 0.0
    %576 = vmatpush2.xpose.msra.mxu0 0.0
    %577 = vmatprep.subr.mxu0 0.0
    %578 = vmatpush2.xpose.msra.mxu0 0.0
    %579 = vmatprep.subr.mxu0 0.0
    %580 = vmatpush2.xpose.msra.mxu0 0.0
    %581 = vmatprep.subr.mxu0 0.0
    %582 = vmatpush2.xpose.msra.mxu0 0.0
    %583 = vmatprep.mubr.f32.mxu0 0.0
    %584 = vmatmul.mubr.f32.gmra.mxu0 %v510
    %v585 = vpop.f32.mrf.mxu0
    %v586 = vadd.f32 0.0, %v585
    %v587 = vpop.f32.mrf.mxu0
    %588 = vmatprep.mubr.f32.mxu0 0.0
    %589 = vmatmul.mubr.f32.gmra.mxu0 %v513
    %v590 = vpop.f32.mrf.mxu0
    %v591 = vadd.f32 0.0, %v590
    %v592 = vpop.f32.mrf.mxu0
    %593 = vdwg.mxu0
    %594 = vrot.lane.b32.xlu0 %v285, 96
    %v595 = vpop.permute.xlu0 %594
    %596 = vrot.lane.b32.xlu0 %v287, 96
    %v597 = vpop.permute.xlu0 %596
    %v599 = vsel %vm330, %v316, 0
    %v602 = vsel %vm330, %v317, 0
    %v604 = vsel %vm330, %v595, 0
    %v606 = vsel %vm330, %v597, 0
    %608 = vmatprep.subr.mxu0 0.0
    %609 = vmatpush1.xpose.msra.mxu0 0.0
    %610 = vmatprep.subr.mxu0 0.0
    %611 = vmatpush1.xpose.msra.mxu0 0.0
    %612 = vmatprep.subr.mxu0 0.0
    %613 = vmatpush1.xpose.msra.mxu0 0.0
    %614 = vmatprep.subr.mxu0 0.0
    %615 = vmatpush1.xpose.msra.mxu0 0.0
    %616 = vmatprep.subr.mxu0 0.0
    %617 = vmatpush1.xpose.msra.mxu0 0.0
    %618 = vmatprep.subr.mxu0 0.0
    %619 = vmatpush1.xpose.msra.mxu0 0.0
    %620 = vmatprep.subr.mxu0 0.0
    %621 = vmatpush1.xpose.msra.mxu0 0.0
    %622 = vmatprep.subr.mxu0 0.0
    %623 = vmatpush1.xpose.msra.mxu0 0.0
    %624 = vmatprep.subr.mxu0 0.0
    %625 = vmatpush1.xpose.msra.mxu0 0.0
    %626 = vmatprep.subr.mxu0 0.0
    %627 = vmatpush1.xpose.msra.mxu0 0.0
    %628 = vmatprep.subr.mxu0 0.0
    %629 = vmatpush1.xpose.msra.mxu0 0.0
    %630 = vmatprep.subr.mxu0 0.0
    %631 = vmatpush1.xpose.msra.mxu0 0.0
    %632 = vmatprep.subr.mxu0 0.0
    %633 = vmatpush1.xpose.msra.mxu0 0.0
    %634 = vmatprep.subr.mxu0 0.0
    %635 = vmatpush1.xpose.msra.mxu0 0.0
    %636 = vmatprep.subr.mxu0 0.0
    %637 = vmatpush1.xpose.msra.mxu0 %v606
    %638 = vmatprep.subr.mxu0 0.0
    %639 = vmatpush1.xpose.msra.mxu0 %v604
    %640 = vmatprep.subr.mxu0 0.0
    %641 = vmatpush2.xpose.msra.mxu0 0.0
    %642 = vmatprep.subr.mxu0 0.0
    %643 = vmatpush2.xpose.msra.mxu0 0.0
    %644 = vmatprep.subr.mxu0 0.0
    %645 = vmatpush2.xpose.msra.mxu0 0.0
    %646 = vmatprep.subr.mxu0 0.0
    %647 = vmatpush2.xpose.msra.mxu0 0.0
    %648 = vmatprep.subr.mxu0 0.0
    %649 = vmatpush2.xpose.msra.mxu0 0.0
    %650 = vmatprep.subr.mxu0 0.0
    %651 = vmatpush2.xpose.msra.mxu0 0.0
    %652 = vmatprep.subr.mxu0 0.0
    %653 = vmatpush2.xpose.msra.mxu0 0.0
    %654 = vmatprep.subr.mxu0 0.0
    %655 = vmatpush2.xpose.msra.mxu0 0.0
    %656 = vmatprep.subr.mxu0 0.0
    %657 = vmatpush2.xpose.msra.mxu0 0.0
    %658 = vmatprep.subr.mxu0 0.0
    %659 = vmatpush2.xpose.msra.mxu0 0.0
    %660 = vmatprep.subr.mxu0 0.0
    %661 = vmatpush2.xpose.msra.mxu0 0.0
    %662 = vmatprep.subr.mxu0 0.0
    %663 = vmatpush2.xpose.msra.mxu0 0.0
    %664 = vmatprep.subr.mxu0 0.0
    %665 = vmatpush2.xpose.msra.mxu0 0.0
    %666 = vmatprep.subr.mxu0 0.0
    %667 = vmatpush2.xpose.msra.mxu0 0.0
    %668 = vmatprep.subr.mxu0 0.0
    %669 = vmatpush2.xpose.msra.mxu0 0.0
    %670 = vmatprep.subr.mxu0 0.0
    %671 = vmatpush2.xpose.msra.mxu0 0.0
    %672 = vmatprep.mubr.f32.mxu0 0.0
    %673 = vmatmul.mubr.f32.gmra.mxu0 %v599
    %v674 = vpop.f32.mrf.mxu0
    %v675 = vadd.f32 0.0, %v674
    %v676 = vpop.f32.mrf.mxu0
    %677 = vmatprep.mubr.f32.mxu0 0.0
    %678 = vmatmul.mubr.f32.gmra.mxu0 %v602
    %v679 = vpop.f32.mrf.mxu0
    %v680 = vadd.f32 0.0, %v679
    %v681 = vpop.f32.mrf.mxu0
    %682 = vdwg.mxu0
    %683 = vrot.lane.b32.xlu0 %v262, 96
    %v684 = vpop.permute.xlu0 %683
    %685 = vrot.lane.b32.xlu0 %v267, 96
    %v686 = vpop.permute.xlu0 %685
    %v688 = vsel %vm330, %v318, 0
    %v691 = vsel %vm330, %v319, 0
    %v693 = vsel %vm330, %v684, 0
    %v695 = vsel %vm330, %v686, 0
    %697 = vmatprep.subr.mxu0 0.0
    %698 = vmatpush1.xpose.msra.mxu0 0.0
    %699 = vmatprep.subr.mxu0 0.0
    %700 = vmatpush1.xpose.msra.mxu0 0.0
    %701 = vmatprep.subr.mxu0 0.0
    %702 = vmatpush1.xpose.msra.mxu0 0.0
    %703 = vmatprep.subr.mxu0 0.0
    %704 = vmatpush1.xpose.msra.mxu0 0.0
    %705 = vmatprep.subr.mxu0 0.0
    %706 = vmatpush1.xpose.msra.mxu0 0.0
    %707 = vmatprep.subr.mxu0 0.0
    %708 = vmatpush1.xpose.msra.mxu0 0.0
    %709 = vmatprep.subr.mxu0 0.0
    %710 = vmatpush1.xpose.msra.mxu0 0.0
    %711 = vmatprep.subr.mxu0 0.0
    %712 = vmatpush1.xpose.msra.mxu0 0.0
    %713 = vmatprep.subr.mxu0 0.0
    %714 = vmatpush1.xpose.msra.mxu0 0.0
    %715 = vmatprep.subr.mxu0 0.0
    %716 = vmatpush1.xpose.msra.mxu0 0.0
    %717 = vmatprep.subr.mxu0 0.0
    %718 = vmatpush1.xpose.msra.mxu0 0.0
    %719 = vmatprep.subr.mxu0 0.0
    %720 = vmatpush1.xpose.msra.mxu0 0.0
    %721 = vmatprep.subr.mxu0 0.0
    %722 = vmatpush1.xpose.msra.mxu0 0.0
    %723 = vmatprep.subr.mxu0 0.0
    %724 = vmatpush1.xpose.msra.mxu0 0.0
    %725 = vmatprep.subr.mxu0 0.0
    %726 = vmatpush1.xpose.msra.mxu0 %v695
    %727 = vmatprep.subr.mxu0 0.0
    %728 = vmatpush1.xpose.msra.mxu0 %v693
    %729 = vmatprep.subr.mxu0 0.0
    %730 = vmatpush2.xpose.msra.mxu0 0.0
    %731 = vmatprep.subr.mxu0 0.0
    %732 = vmatpush2.xpose.msra.mxu0 0.0
    %733 = vmatprep.subr.mxu0 0.0
    %734 = vmatpush2.xpose.msra.mxu0 0.0
    %735 = vmatprep.subr.mxu0 0.0
    %736 = vmatpush2.xpose.msra.mxu0 0.0
    %737 = vmatprep.subr.mxu0 0.0
    %738 = vmatpush2.xpose.msra.mxu0 0.0
    %739 = vmatprep.subr.mxu0 0.0
    %740 = vmatpush2.xpose.msra.mxu0 0.0
    %741 = vmatprep.subr.mxu0 0.0
    %742 = vmatpush2.xpose.msra.mxu0 0.0
    %743 = vmatprep.subr.mxu0 0.0
    %744 = vmatpush2.xpose.msra.mxu0 0.0
    %745 = vmatprep.subr.mxu0 0.0
    %746 = vmatpush2.xpose.msra.mxu0 0.0
    %747 = vmatprep.subr.mxu0 0.0
    %748 = vmatpush2.xpose.msra.mxu0 0.0
    %749 = vmatprep.subr.mxu0 0.0
    %750 = vmatpush2.xpose.msra.mxu0 0.0
    %751 = vmatprep.subr.mxu0 0.0
    %752 = vmatpush2.xpose.msra.mxu0 0.0
    %753 = vmatprep.subr.mxu0 0.0
    %754 = vmatpush2.xpose.msra.mxu0 0.0
    %755 = vmatprep.subr.mxu0 0.0
    %756 = vmatpush2.xpose.msra.mxu0 0.0
    %757 = vmatprep.subr.mxu0 0.0
    %758 = vmatpush2.xpose.msra.mxu0 0.0
    %759 = vmatprep.subr.mxu0 0.0
    %760 = vmatpush2.xpose.msra.mxu0 0.0
    %761 = vmatprep.mubr.f32.mxu0 0.0
    %762 = vmatmul.mubr.f32.gmra.mxu0 %v688
    %v763 = vpop.f32.mrf.mxu0
    %v764 = vadd.f32 0.0, %v763
    %v765 = vpop.f32.mrf.mxu0
    %766 = vmatprep.mubr.f32.mxu0 0.0
    %767 = vmatmul.mubr.f32.gmra.mxu0 %v691
    %v768 = vpop.f32.mrf.mxu0
    %v769 = vadd.f32 0.0, %v768
    %v770 = vpop.f32.mrf.mxu0
    %771 = vdwg.mxu0
    %772 = vrot.lane.b32.xlu0 %v293, 96
    %v773 = vpop.permute.xlu0 %772
    %774 = vrot.lane.b32.xlu0 %v295, 96
    %v775 = vpop.permute.xlu0 %774
    %v777 = vsel %vm330, %v320, 0
    %v780 = vsel %vm330, %v321, 0
    %v782 = vsel %vm330, %v773, 0
    %v784 = vsel %vm330, %v775, 0
    %786 = vmatprep.subr.mxu0 0.0
    %787 = vmatpush1.xpose.msra.mxu0 0.0
    %788 = vmatprep.subr.mxu0 0.0
    %789 = vmatpush1.xpose.msra.mxu0 0.0
    %790 = vmatprep.subr.mxu0 0.0
    %791 = vmatpush1.xpose.msra.mxu0 0.0
    %792 = vmatprep.subr.mxu0 0.0
    %793 = vmatpush1.xpose.msra.mxu0 0.0
    %794 = vmatprep.subr.mxu0 0.0
    %795 = vmatpush1.xpose.msra.mxu0 0.0
    %796 = vmatprep.subr.mxu0 0.0
    %797 = vmatpush1.xpose.msra.mxu0 0.0
    %798 = vmatprep.subr.mxu0 0.0
    %799 = vmatpush1.xpose.msra.mxu0 0.0
    %800 = vmatprep.subr.mxu0 0.0
    %801 = vmatpush1.xpose.msra.mxu0 0.0
    %802 = vmatprep.subr.mxu0 0.0
    %803 = vmatpush1.xpose.msra.mxu0 0.0
    %804 = vmatprep.subr.mxu0 0.0
    %805 = vmatpush1.xpose.msra.mxu0 0.0
    %806 = vmatprep.subr.mxu0 0.0
    %807 = vmatpush1.xpose.msra.mxu0 0.0
    %808 = vmatprep.subr.mxu0 0.0
    %809 = vmatpush1.xpose.msra.mxu0 0.0
    %810 = vmatprep.subr.mxu0 0.0
    %811 = vmatpush1.xpose.msra.mxu0 0.0
    %812 = vmatprep.subr.mxu0 0.0
    %813 = vmatpush1.xpose.msra.mxu0 0.0
    %814 = vmatprep.subr.mxu0 0.0
    %815 = vmatpush1.xpose.msra.mxu0 %v784
    %816 = vmatprep.subr.mxu0 0.0
    %817 = vmatpush1.xpose.msra.mxu0 %v782
    %818 = vmatprep.subr.mxu0 0.0
    %819 = vmatpush2.xpose.msra.mxu0 0.0
    %820 = vmatprep.subr.mxu0 0.0
    %821 = vmatpush2.xpose.msra.mxu0 0.0
    %822 = vmatprep.subr.mxu0 0.0
    %823 = vmatpush2.xpose.msra.mxu0 0.0
    %824 = vmatprep.subr.mxu0 0.0
    %825 = vmatpush2.xpose.msra.mxu0 0.0
    %826 = vmatprep.subr.mxu0 0.0
    %827 = vmatpush2.xpose.msra.mxu0 0.0
    %828 = vmatprep.subr.mxu0 0.0
    %829 = vmatpush2.xpose.msra.mxu0 0.0
    %830 = vmatprep.subr.mxu0 0.0
    %831 = vmatpush2.xpose.msra.mxu0 0.0
    %832 = vmatprep.subr.mxu0 0.0
    %833 = vmatpush2.xpose.msra.mxu0 0.0
    %834 = vmatprep.subr.mxu0 0.0
    %835 = vmatpush2.xpose.msra.mxu0 0.0
    %836 = vmatprep.subr.mxu0 0.0
    %837 = vmatpush2.xpose.msra.mxu0 0.0
    %838 = vmatprep.subr.mxu0 0.0
    %839 = vmatpush2.xpose.msra.mxu0 0.0
    %840 = vmatprep.subr.mxu0 0.0
    %841 = vmatpush2.xpose.msra.mxu0 0.0
    %842 = vmatprep.subr.mxu0 0.0
    %843 = vmatpush2.xpose.msra.mxu0 0.0
    %844 = vmatprep.subr.mxu0 0.0
    %845 = vmatpush2.xpose.msra.mxu0 0.0
    %846 = vmatprep.subr.mxu0 0.0
    %847 = vmatpush2.xpose.msra.mxu0 0.0
    %848 = vmatprep.subr.mxu0 0.0
    %849 = vmatpush2.xpose.msra.mxu0 0.0
    %850 = vmatprep.mubr.f32.mxu0 0.0
    %851 = vmatmul.mubr.f32.gmra.mxu0 %v777
    %v852 = vpop.f32.mrf.mxu0
    %v853 = vadd.f32 0.0, %v852
    %v854 = vpop.f32.mrf.mxu0
    %855 = vmatprep.mubr.f32.mxu0 0.0
    %856 = vmatmul.mubr.f32.gmra.mxu0 %v780
    %v857 = vpop.f32.mrf.mxu0
    %v858 = vadd.f32 0.0, %v857
    %v859 = vpop.f32.mrf.mxu0
    %860 = vdwg.mxu0
    %861 = vrot.lane.b32.xlu0 %v299, 96
    %v862 = vpop.permute.xlu0 %861
    %863 = vrot.lane.b32.xlu0 %v301, 96
    %v864 = vpop.permute.xlu0 %863
    %v866 = vsel %vm330, %v322, 0
    %v869 = vsel %vm330, %v323, 0
    %v871 = vsel %vm330, %v862, 0
    %v873 = vsel %vm330, %v864, 0
    %875 = vmatprep.subr.mxu0 0.0
    %876 = vmatpush1.xpose.msra.mxu0 0.0
    %877 = vmatprep.subr.mxu0 0.0
    %878 = vmatpush1.xpose.msra.mxu0 0.0
    %879 = vmatprep.subr.mxu0 0.0
    %880 = vmatpush1.xpose.msra.mxu0 0.0
    %881 = vmatprep.subr.mxu0 0.0
    %882 = vmatpush1.xpose.msra.mxu0 0.0
    %883 = vmatprep.subr.mxu0 0.0
    %884 = vmatpush1.xpose.msra.mxu0 0.0
    %885 = vmatprep.subr.mxu0 0.0
    %886 = vmatpush1.xpose.msra.mxu0 0.0
    %887 = vmatprep.subr.mxu0 0.0
    %888 = vmatpush1.xpose.msra.mxu0 0.0
    %889 = vmatprep.subr.mxu0 0.0
    %890 = vmatpush1.xpose.msra.mxu0 0.0
    %891 = vmatprep.subr.mxu0 0.0
    %892 = vmatpush1.xpose.msra.mxu0 0.0
    %893 = vmatprep.subr.mxu0 0.0
    %894 = vmatpush1.xpose.msra.mxu0 0.0
    %895 = vmatprep.subr.mxu0 0.0
    %896 = vmatpush1.xpose.msra.mxu0 0.0
    %897 = vmatprep.subr.mxu0 0.0
    %898 = vmatpush1.xpose.msra.mxu0 0.0
    %899 = vmatprep.subr.mxu0 0.0
    %900 = vmatpush1.xpose.msra.mxu0 0.0
    %901 = vmatprep.subr.mxu0 0.0
    %902 = vmatpush1.xpose.msra.mxu0 0.0
    %903 = vmatprep.subr.mxu0 0.0
    %904 = vmatpush1.xpose.msra.mxu0 %v873
    %905 = vmatprep.subr.mxu0 0.0
    %906 = vmatpush1.xpose.msra.mxu0 %v871
    %907 = vmatprep.subr.mxu0 0.0
    %908 = vmatpush2.xpose.msra.mxu0 0.0
    %909 = vmatprep.subr.mxu0 0.0
    %910 = vmatpush2.xpose.msra.mxu0 0.0
    %911 = vmatprep.subr.mxu0 0.0
    %912 = vmatpush2.xpose.msra.mxu0 0.0
    %913 = vmatprep.subr.mxu0 0.0
    %914 = vmatpush2.xpose.msra.mxu0 0.0
    %915 = vmatprep.subr.mxu0 0.0
    %916 = vmatpush2.xpose.msra.mxu0 0.0
    %917 = vmatprep.subr.mxu0 0.0
    %918 = vmatpush2.xpose.msra.mxu0 0.0
    %919 = vmatprep.subr.mxu0 0.0
    %920 = vmatpush2.xpose.msra.mxu0 0.0
    %921 = vmatprep.subr.mxu0 0.0
    %922 = vmatpush2.xpose.msra.mxu0 0.0
    %923 = vmatprep.subr.mxu0 0.0
    %924 = vmatpush2.xpose.msra.mxu0 0.0
    %925 = vmatprep.subr.mxu0 0.0
    %926 = vmatpush2.xpose.msra.mxu0 0.0
    %927 = vmatprep.subr.mxu0 0.0
    %928 = vmatpush2.xpose.msra.mxu0 0.0
    %929 = vmatprep.subr.mxu0 0.0
    %930 = vmatpush2.xpose.msra.mxu0 0.0
    %931 = vmatprep.subr.mxu0 0.0
    %932 = vmatpush2.xpose.msra.mxu0 0.0
    %933 = vmatprep.subr.mxu0 0.0
    %934 = vmatpush2.xpose.msra.mxu0 0.0
    %935 = vmatprep.subr.mxu0 0.0
    %936 = vmatpush2.xpose.msra.mxu0 0.0
    %937 = vmatprep.subr.mxu0 0.0
    %938 = vmatpush2.xpose.msra.mxu0 0.0
    %939 = vmatprep.mubr.f32.mxu0 0.0
    %940 = vmatmul.mubr.f32.gmra.mxu0 %v866
    %v941 = vpop.f32.mrf.mxu0
    %v942 = vadd.f32 0.0, %v941
    %v943 = vpop.f32.mrf.mxu0
    %944 = vmatprep.mubr.f32.mxu0 0.0
    %945 = vmatmul.mubr.f32.gmra.mxu0 %v869
    %v946 = vpop.f32.mrf.mxu0
    %v947 = vadd.f32 0.0, %v946
    %v948 = vpop.f32.mrf.mxu0
    %949 = vdwg.mxu0
    %950 = vrot.lane.b32.xlu0 %v305, 96
    %v951 = vpop.permute.xlu0 %950
    %952 = vrot.lane.b32.xlu0 %v307, 96
    %v953 = vpop.permute.xlu0 %952
    %v955 = vsel %vm330, %v324, 0
    %v958 = vsel %vm330, %v325, 0
    %v960 = vsel %vm330, %v951, 0
    %v962 = vsel %vm330, %v953, 0
    %964 = vmatprep.subr.mxu0 0.0
    %965 = vmatpush1.xpose.msra.mxu0 0.0
    %966 = vmatprep.subr.mxu0 0.0
    %967 = vmatpush1.xpose.msra.mxu0 0.0
    %968 = vmatprep.subr.mxu0 0.0
    %969 = vmatpush1.xpose.msra.mxu0 0.0
    %970 = vmatprep.subr.mxu0 0.0
    %971 = vmatpush1.xpose.msra.mxu0 0.0
    %972 = vmatprep.subr.mxu0 0.0
    %973 = vmatpush1.xpose.msra.mxu0 0.0
    %974 = vmatprep.subr.mxu0 0.0
    %975 = vmatpush1.xpose.msra.mxu0 0.0
    %976 = vmatprep.subr.mxu0 0.0
    %977 = vmatpush1.xpose.msra.mxu0 0.0
    %978 = vmatprep.subr.mxu0 0.0
    %979 = vmatpush1.xpose.msra.mxu0 0.0
    %980 = vmatprep.subr.mxu0 0.0
    %981 = vmatpush1.xpose.msra.mxu0 0.0
    %982 = vmatprep.subr.mxu0 0.0
    %983 = vmatpush1.xpose.msra.mxu0 0.0
    %984 = vmatprep.subr.mxu0 0.0
    %985 = vmatpush1.xpose.msra.mxu0 0.0
    %986 = vmatprep.subr.mxu0 0.0
    %987 = vmatpush1.xpose.msra.mxu0 0.0
    %988 = vmatprep.subr.mxu0 0.0
    %989 = vmatpush1.xpose.msra.mxu0 0.0
    %990 = vmatprep.subr.mxu0 0.0
    %991 = vmatpush1.xpose.msra.mxu0 0.0
    %992 = vmatprep.subr.mxu0 0.0
    %993 = vmatpush1.xpose.msra.mxu0 %v962
    %994 = vmatprep.subr.mxu0 0.0
    %995 = vmatpush1.xpose.msra.mxu0 %v960
    %996 = vmatprep.subr.mxu0 0.0
    %997 = vmatpush2.xpose.msra.mxu0 0.0
    %998 = vmatprep.subr.mxu0 0.0
    %999 = vmatpush2.xpose.msra.mxu0 0.0
    %1000 = vmatprep.subr.mxu0 0.0
    %1001 = vmatpush2.xpose.msra.mxu0 0.0
    %1002 = vmatprep.subr.mxu0 0.0
    %1003 = vmatpush2.xpose.msra.mxu0 0.0
    %1004 = vmatprep.subr.mxu0 0.0
    %1005 = vmatpush2.xpose.msra.mxu0 0.0
    %1006 = vmatprep.subr.mxu0 0.0
    %1007 = vmatpush2.xpose.msra.mxu0 0.0
    %1008 = vmatprep.subr.mxu0 0.0
    %1009 = vmatpush2.xpose.msra.mxu0 0.0
    %1010 = vmatprep.subr.mxu0 0.0
    %1011 = vmatpush2.xpose.msra.mxu0 0.0
    %1012 = vmatprep.subr.mxu0 0.0
    %1013 = vmatpush2.xpose.msra.mxu0 0.0
    %1014 = vmatprep.subr.mxu0 0.0
    %1015 = vmatpush2.xpose.msra.mxu0 0.0
    %1016 = vmatprep.subr.mxu0 0.0
    %1017 = vmatpush2.xpose.msra.mxu0 0.0
    %1018 = vmatprep.subr.mxu0 0.0
    %1019 = vmatpush2.xpose.msra.mxu0 0.0
    %1020 = vmatprep.subr.mxu0 0.0
    %1021 = vmatpush2.xpose.msra.mxu0 0.0
    %1022 = vmatprep.subr.mxu0 0.0
    %1023 = vmatpush2.xpose.msra.mxu0 0.0
    %1024 = vmatprep.subr.mxu0 0.0
    %1025 = vmatpush2.xpose.msra.mxu0 0.0
    %1026 = vmatprep.subr.mxu0 0.0
    %1027 = vmatpush2.xpose.msra.mxu0 0.0
    %1028 = vmatprep.mubr.f32.mxu0 0.0
    %1029 = vmatmul.mubr.f32.gmra.mxu0 %v955
    %v1030 = vpop.f32.mrf.mxu0
    %v1031 = vadd.f32 0.0, %v1030
    %v1032 = vpop.f32.mrf.mxu0
    %1033 = vmatprep.mubr.f32.mxu0 0.0
    %1034 = vmatmul.mubr.f32.gmra.mxu0 %v958
    %v1035 = vpop.f32.mrf.mxu0
    %v1036 = vadd.f32 0.0, %v1035
    %v1037 = vpop.f32.mrf.mxu0
    %1038 = vdwg.mxu0
    %vm1039 = vcmask 130048
    %v1040 = vsel %vm1039, %v408, -inf
    %1041 = vmax.xlane.f32.xlu0 %v1040
    %v1042 = vpop.xlane.xlu0 %1041
    %v1043 = vsel %vm1039, %v413, -inf
    %1044 = vmax.xlane.f32.xlu0 %v1043
    %v1045 = vpop.xlane.xlu0 %1044
    %v1046 = vsel %vm1039, %v497, -inf
    %1047 = vmax.xlane.f32.xlu0 %v1046
    %v1048 = vpop.xlane.xlu0 %1047
    %v1049 = vsel %vm1039, %v502, -inf
    %1050 = vmax.xlane.f32.xlu0 %v1049
    %v1051 = vpop.xlane.xlu0 %1050
    %v1052 = vsel %vm1039, %v586, -inf
    %1053 = vmax.xlane.f32.xlu0 %v1052
    %v1054 = vpop.xlane.xlu0 %1053
    %v1055 = vsel %vm1039, %v591, -inf
    %1056 = vmax.xlane.f32.xlu0 %v1055
    %v1057 = vpop.xlane.xlu0 %1056
    %v1058 = vsel %vm1039, %v675, -inf
    %1059 = vmax.xlane.f32.xlu0 %v1058
    %v1060 = vpop.xlane.xlu0 %1059
    %v1061 = vsel %vm1039, %v680, -inf
    %1062 = vmax.xlane.f32.xlu0 %v1061
    %v1063 = vpop.xlane.xlu0 %1062
    %v1064 = vsel %vm1039, %v764, -inf
    %1065 = vmax.xlane.f32.xlu0 %v1064
    %v1066 = vpop.xlane.xlu0 %1065
    %v1067 = vsel %vm1039, %v769, -inf
    %1068 = vmax.xlane.f32.xlu0 %v1067
    %v1069 = vpop.xlane.xlu0 %1068
    %v1070 = vsel %vm1039, %v853, -inf
    %1071 = vmax.xlane.f32.xlu0 %v1070
    %v1072 = vpop.xlane.xlu0 %1071
    %v1073 = vsel %vm1039, %v858, -inf
    %1074 = vmax.xlane.f32.xlu0 %v1073
    %v1075 = vpop.xlane.xlu0 %1074
    %v1076 = vsel %vm1039, %v942, -inf
    %1077 = vmax.xlane.f32.xlu0 %v1076
    %v1078 = vpop.xlane.xlu0 %1077
    %v1079 = vsel %vm1039, %v947, -inf
    %1080 = vmax.xlane.f32.xlu0 %v1079
    %v1081 = vpop.xlane.xlu0 %1080
    %v1082 = vsel %vm1039, %v1031, -inf
    %1083 = vmax.xlane.f32.xlu0 %v1082
    %v1084 = vpop.xlane.xlu0 %1083
    %v1085 = vsel %vm1039, %v1036, -inf
    %1086 = vmax.xlane.f32.xlu0 %v1085
    %v1087 = vpop.xlane.xlu0 %1086
    %v1088 = vsub.f32 %v408, %v1042
    %v1089 = vsub.f32 %v413, %v1045
    %v1090 = vsub.f32 %v497, %v1048
    %v1091 = vsub.f32 %v502, %v1051
    %v1092 = vsub.f32 %v586, %v1054
    %v1093 = vsub.f32 %v591, %v1057
    %v1094 = vsub.f32 %v675, %v1060
    %v1095 = vsub.f32 %v680, %v1063
    %v1096 = vsub.f32 %v764, %v1066
    %v1097 = vsub.f32 %v769, %v1069
    %v1098 = vsub.f32 %v853, %v1072
    %v1099 = vsub.f32 %v858, %v1075
    %v1100 = vsub.f32 %v942, %v1078
    %v1101 = vsub.f32 %v947, %v1081
    %v1102 = vsub.f32 %v1031, %v1084
    %v1103 = vsub.f32 %v1036, %v1087
    %v1104 = vmul.f32 %v1088, 1.442695
    %v1105 = vpow.pop %v1104
    %v1106 = vmul.f32 %v1089, 1.442695
    %v1107 = vpow.pop %v1106
    %v1108 = vmul.f32 %v1090, 1.442695
    %v1109 = vpow.pop %v1108
    %v1110 = vmul.f32 %v1091, 1.442695
    %v1111 = vpow.pop %v1110
    %v1112 = vmul.f32 %v1092, 1.442695
    %v1113 = vpow.pop %v1112
    %v1114 = vmul.f32 %v1093, 1.442695
    %v1115 = vpow.pop %v1114
    %v1116 = vmul.f32 %v1094, 1.442695
    %v1117 = vpow.pop %v1116
    %v1118 = vmul.f32 %v1095, 1.442695
    %v1119 = vpow.pop %v1118
    %v1120 = vmul.f32 %v1096, 1.442695
    %v1121 = vpow.pop %v1120
    %v1122 = vmul.f32 %v1097, 1.442695
    %v1123 = vpow.pop %v1122
    %v1124 = vmul.f32 %v1098, 1.442695
    %v1125 = vpow.pop %v1124
    %v1126 = vmul.f32 %v1099, 1.442695
    %v1127 = vpow.pop %v1126
    %v1128 = vmul.f32 %v1100, 1.442695
    %v1129 = vpow.pop %v1128
    %v1130 = vmul.f32 %v1101, 1.442695
    %v1131 = vpow.pop %v1130
    %v1132 = vmul.f32 %v1102, 1.442695
    %v1133 = vpow.pop %v1132
    %v1134 = vmul.f32 %v1103, 1.442695
    %v1135 = vpow.pop %v1134
    %v1136 = vsel %vm1039, %v1105, 0.0
    %1137 = vadd.xlane.f32.xlu0 %v1136
    %v1138 = vpop.xlane.xlu0 %1137
    %v1139 = vsel %vm1039, %v1107, 0.0
    %1140 = vadd.xlane.f32.xlu0 %v1139
    %v1141 = vpop.xlane.xlu0 %1140
    %v1142 = vsel %vm1039, %v1109, 0.0
    %1143 = vadd.xlane.f32.xlu0 %v1142
    %v1144 = vpop.xlane.xlu0 %1143
    %v1145 = vsel %vm1039, %v1111, 0.0
    %1146 = vadd.xlane.f32.xlu0 %v1145
    %v1147 = vpop.xlane.xlu0 %1146
    %v1148 = vsel %vm1039, %v1113, 0.0
    %1149 = vadd.xlane.f32.xlu0 %v1148
    %v1150 = vpop.xlane.xlu0 %1149
    %v1151 = vsel %vm1039, %v1115, 0.0
    %1152 = vadd.xlane.f32.xlu0 %v1151
    %v1153 = vpop.xlane.xlu0 %1152
    %v1154 = vsel %vm1039, %v1117, 0.0
    %1155 = vadd.xlane.f32.xlu0 %v1154
    %v1156 = vpop.xlane.xlu0 %1155
    %v1157 = vsel %vm1039, %v1119, 0.0
    %1158 = vadd.xlane.f32.xlu0 %v1157
    %v1159 = vpop.xlane.xlu0 %1158
    %v1160 = vsel %vm1039, %v1121, 0.0
    %1161 = vadd.xlane.f32.xlu0 %v1160
    %v1162 = vpop.xlane.xlu0 %1161
    %v1163 = vsel %vm1039, %v1123, 0.0
    %1164 = vadd.xlane.f32.xlu0 %v1163
    %v1165 = vpop.xlane.xlu0 %1164
    %v1166 = vsel %vm1039, %v1125, 0.0
    %1167 = vadd.xlane.f32.xlu0 %v1166
    %v1168 = vpop.xlane.xlu0 %1167
    %v1169 = vsel %vm1039, %v1127, 0.0
    %1170 = vadd.xlane.f32.xlu0 %v1169
    %v1171 = vpop.xlane.xlu0 %1170
    %v1172 = vsel %vm1039, %v1129, 0.0
    %1173 = vadd.xlane.f32.xlu0 %v1172
    %v1174 = vpop.xlane.xlu0 %1173
    %v1175 = vsel %vm1039, %v1131, 0.0
    %1176 = vadd.xlane.f32.xlu0 %v1175
    %v1177 = vpop.xlane.xlu0 %1176
    %v1178 = vsel %vm1039, %v1133, 0.0
    %1179 = vadd.xlane.f32.xlu0 %v1178
    %v1180 = vpop.xlane.xlu0 %1179
    %v1181 = vsel %vm1039, %v1135, 0.0
    %1182 = vadd.xlane.f32.xlu0 %v1181
    %v1183 = vpop.xlane.xlu0 %1182
    %v1184 = vrcp.pop %v1138
    %v1185 = vrcp.pop %v1141
    %v1186 = vrcp.pop %v1144
    %v1187 = vrcp.pop %v1147
    %v1188 = vrcp.pop %v1150
    %v1189 = vrcp.pop %v1153
    %v1190 = vrcp.pop %v1156
    %v1191 = vrcp.pop %v1159
    %v1192 = vrcp.pop %v1162
    %v1193 = vrcp.pop %v1165
    %v1194 = vrcp.pop %v1168
    %v1195 = vrcp.pop %v1171
    %v1196 = vrcp.pop %v1174
    %v1197 = vrcp.pop %v1177
    %v1198 = vrcp.pop %v1180
    %v1199 = vrcp.pop %v1183
    %v1200 = vmul.f32 %v1105, %v1184
    %v1201 = vmul.f32 %v1107, %v1185
    %v1202 = vmul.f32 %v1109, %v1186
    %v1203 = vmul.f32 %v1111, %v1187
    %v1204 = vmul.f32 %v1113, %v1188
    %v1205 = vmul.f32 %v1115, %v1189
    %v1206 = vmul.f32 %v1117, %v1190
    %v1207 = vmul.f32 %v1119, %v1191
    %v1208 = vmul.f32 %v1121, %v1192
    %v1209 = vmul.f32 %v1123, %v1193
    %v1210 = vmul.f32 %v1125, %v1194
    %v1211 = vmul.f32 %v1127, %v1195
    %v1212 = vmul.f32 %v1129, %v1196
    %v1213 = vmul.f32 %v1131, %v1197
    %v1214 = vmul.f32 %v1133, %v1198
    %v1215 = vmul.f32 %v1135, %v1199
    %1216 = vrot.lane.b32.xlu0 %v252, 64
    %v1217 = vpop.permute.xlu0 %1216
    %1218 = vrot.lane.b32.xlu0 %v257, 64
    %v1219 = vpop.permute.xlu0 %1218
    %v1223 = vsel %vm1039, %v1200, 0
    %v1226 = vsel %vm1039, %v1201, 0
    %1228 = vmatprep.subr.mxu0 0.0
    %1229 = vmatpush1.msra.mxu0 0.0
    %1230 = vmatprep.subr.mxu0 0.0
    %1231 = vmatpush1.msra.mxu0 0.0
    %1232 = vmatprep.subr.mxu0 0.0
    %1233 = vmatpush1.msra.mxu0 0.0
    %1234 = vmatprep.subr.mxu0 0.0
    %1235 = vmatpush1.msra.mxu0 0.0
    %1236 = vmatprep.subr.mxu0 0.0
    %1237 = vmatpush1.msra.mxu0 0.0
    %1238 = vmatprep.subr.mxu0 0.0
    %1239 = vmatpush1.msra.mxu0 0.0
    %1240 = vmatprep.subr.mxu0 0.0
    %1241 = vmatpush1.msra.mxu0 0.0
    %1242 = vmatprep.subr.mxu0 0.0
    %1243 = vmatpush1.msra.mxu0 0.0
    %1244 = vmatprep.subr.mxu0 0.0
    %1245 = vmatpush1.msra.mxu0 0.0
    %1246 = vmatprep.subr.mxu0 0.0
    %1247 = vmatpush1.msra.mxu0 0.0
    %1248 = vmatprep.subr.mxu0 0.0
    %1249 = vmatpush1.msra.mxu0 0.0
    %1250 = vmatprep.subr.mxu0 0.0
    %1251 = vmatpush1.msra.mxu0 0.0
    %1252 = vmatprep.subr.mxu0 0.0
    %1253 = vmatpush1.msra.mxu0 0.0
    %1254 = vmatprep.subr.mxu0 0.0
    %1255 = vmatpush1.msra.mxu0 0.0
    %1256 = vmatprep.subr.mxu0 0.0
    %1257 = vmatpush1.msra.mxu0 %v1219
    %1258 = vmatprep.subr.mxu0 0.0
    %1259 = vmatpush1.msra.mxu0 %v1217
    %1260 = vmatprep.subr.mxu0 0.0
    %1261 = vmatpush2.msra.mxu0 0.0
    %1262 = vmatprep.subr.mxu0 0.0
    %1263 = vmatpush2.msra.mxu0 0.0
    %1264 = vmatprep.subr.mxu0 0.0
    %1265 = vmatpush2.msra.mxu0 0.0
    %1266 = vmatprep.subr.mxu0 0.0
    %1267 = vmatpush2.msra.mxu0 0.0
    %1268 = vmatprep.subr.mxu0 0.0
    %1269 = vmatpush2.msra.mxu0 0.0
    %1270 = vmatprep.subr.mxu0 0.0
    %1271 = vmatpush2.msra.mxu0 0.0
    %1272 = vmatprep.subr.mxu0 0.0
    %1273 = vmatpush2.msra.mxu0 0.0
    %1274 = vmatprep.subr.mxu0 0.0
    %1275 = vmatpush2.msra.mxu0 0.0
    %1276 = vmatprep.subr.mxu0 0.0
    %1277 = vmatpush2.msra.mxu0 0.0
    %1278 = vmatprep.subr.mxu0 0.0
    %1279 = vmatpush2.msra.mxu0 0.0
    %1280 = vmatprep.subr.mxu0 0.0
    %1281 = vmatpush2.msra.mxu0 0.0
    %1282 = vmatprep.subr.mxu0 0.0
    %1283 = vmatpush2.msra.mxu0 0.0
    %1284 = vmatprep.subr.mxu0 0.0
    %1285 = vmatpush2.msra.mxu0 0.0
    %1286 = vmatprep.subr.mxu0 0.0
    %1287 = vmatpush2.msra.mxu0 0.0
    %1288 = vmatprep.subr.mxu0 0.0
    %1289 = vmatpush2.msra.mxu0 0.0
    %1290 = vmatprep.subr.mxu0 0.0
    %1291 = vmatpush2.msra.mxu0 0.0
    %1292 = vmatprep.mubr.f32.mxu0 0.0
    %1293 = vmatmul.mubr.f32.gmra.mxu0 %v1223
    %v1294 = vpop.f32.mrf.mxu0
    %v1295 = vadd.f32 0.0, %v1294
    %v1296 = vpop.f32.mrf.mxu0
    %1297 = vmatprep.mubr.f32.mxu0 0.0
    %1298 = vmatmul.mubr.f32.gmra.mxu0 %v1226
    %v1299 = vpop.f32.mrf.mxu0
    %v1300 = vadd.f32 0.0, %v1299
    %v1301 = vpop.f32.mrf.mxu0
    %1302 = vdwg.mxu0
    %1303 = vrot.lane.b32.xlu0 %v273, 64
    %v1304 = vpop.permute.xlu0 %1303
    %1305 = vrot.lane.b32.xlu0 %v275, 64
    %v1306 = vpop.permute.xlu0 %1305
    %v1310 = vsel %vm1039, %v1202, 0
    %v1313 = vsel %vm1039, %v1203, 0
    %1315 = vmatprep.subr.mxu0 0.0
    %1316 = vmatpush1.msra.mxu0 0.0
    %1317 = vmatprep.subr.mxu0 0.0
    %1318 = vmatpush1.msra.mxu0 0.0
    %1319 = vmatprep.subr.mxu0 0.0
    %1320 = vmatpush1.msra.mxu0 0.0
    %1321 = vmatprep.subr.mxu0 0.0
    %1322 = vmatpush1.msra.mxu0 0.0
    %1323 = vmatprep.subr.mxu0 0.0
    %1324 = vmatpush1.msra.mxu0 0.0
    %1325 = vmatprep.subr.mxu0 0.0
    %1326 = vmatpush1.msra.mxu0 0.0
    %1327 = vmatprep.subr.mxu0 0.0
    %1328 = vmatpush1.msra.mxu0 0.0
    %1329 = vmatprep.subr.mxu0 0.0
    %1330 = vmatpush1.msra.mxu0 0.0
    %1331 = vmatprep.subr.mxu0 0.0
    %1332 = vmatpush1.msra.mxu0 0.0
    %1333 = vmatprep.subr.mxu0 0.0
    %1334 = vmatpush1.msra.mxu0 0.0
    %1335 = vmatprep.subr.mxu0 0.0
    %1336 = vmatpush1.msra.mxu0 0.0
    %1337 = vmatprep.subr.mxu0 0.0
    %1338 = vmatpush1.msra.mxu0 0.0
    %1339 = vmatprep.subr.mxu0 0.0
    %1340 = vmatpush1.msra.mxu0 0.0
    %1341 = vmatprep.subr.mxu0 0.0
    %1342 = vmatpush1.msra.mxu0 0.0
    %1343 = vmatprep.subr.mxu0 0.0
    %1344 = vmatpush1.msra.mxu0 %v1306
    %1345 = vmatprep.subr.mxu0 0.0
    %1346 = vmatpush1.msra.mxu0 %v1304
    %1347 = vmatprep.subr.mxu0 0.0
    %1348 = vmatpush2.msra.mxu0 0.0
    %1349 = vmatprep.subr.mxu0 0.0
    %1350 = vmatpush2.msra.mxu0 0.0
    %1351 = vmatprep.subr.mxu0 0.0
    %1352 = vmatpush2.msra.mxu0 0.0
    %1353 = vmatprep.subr.mxu0 0.0
    %1354 = vmatpush2.msra.mxu0 0.0
    %1355 = vmatprep.subr.mxu0 0.0
    %1356 = vmatpush2.msra.mxu0 0.0
    %1357 = vmatprep.subr.mxu0 0.0
    %1358 = vmatpush2.msra.mxu0 0.0
    %1359 = vmatprep.subr.mxu0 0.0
    %1360 = vmatpush2.msra.mxu0 0.0
    %1361 = vmatprep.subr.mxu0 0.0
    %1362 = vmatpush2.msra.mxu0 0.0
    %1363 = vmatprep.subr.mxu0 0.0
    %1364 = vmatpush2.msra.mxu0 0.0
    %1365 = vmatprep.subr.mxu0 0.0
    %1366 = vmatpush2.msra.mxu0 0.0
    %1367 = vmatprep.subr.mxu0 0.0
    %1368 = vmatpush2.msra.mxu0 0.0
    %1369 = vmatprep.subr.mxu0 0.0
    %1370 = vmatpush2.msra.mxu0 0.0
    %1371 = vmatprep.subr.mxu0 0.0
    %1372 = vmatpush2.msra.mxu0 0.0
    %1373 = vmatprep.subr.mxu0 0.0
    %1374 = vmatpush2.msra.mxu0 0.0
    %1375 = vmatprep.subr.mxu0 0.0
    %1376 = vmatpush2.msra.mxu0 0.0
    %1377 = vmatprep.subr.mxu0 0.0
    %1378 = vmatpush2.msra.mxu0 0.0
    %1379 = vmatprep.mubr.f32.mxu0 0.0
    %1380 = vmatmul.mubr.f32.gmra.mxu0 %v1310
    %v1381 = vpop.f32.mrf.mxu0
    %v1382 = vadd.f32 0.0, %v1381
    %v1383 = vpop.f32.mrf.mxu0
    %1384 = vmatprep.mubr.f32.mxu0 0.0
    %1385 = vmatmul.mubr.f32.gmra.mxu0 %v1313
    %v1386 = vpop.f32.mrf.mxu0
    %v1387 = vadd.f32 0.0, %v1386
    %v1388 = vpop.f32.mrf.mxu0
    %1389 = vdwg.mxu0
    %1390 = vrot.lane.b32.xlu0 %v279, 64
    %v1391 = vpop.permute.xlu0 %1390
    %1392 = vrot.lane.b32.xlu0 %v281, 64
    %v1393 = vpop.permute.xlu0 %1392
    %v1397 = vsel %vm1039, %v1204, 0
    %v1400 = vsel %vm1039, %v1205, 0
    %1402 = vmatprep.subr.mxu0 0.0
    %1403 = vmatpush1.msra.mxu0 0.0
    %1404 = vmatprep.subr.mxu0 0.0
    %1405 = vmatpush1.msra.mxu0 0.0
    %1406 = vmatprep.subr.mxu0 0.0
    %1407 = vmatpush1.msra.mxu0 0.0
    %1408 = vmatprep.subr.mxu0 0.0
    %1409 = vmatpush1.msra.mxu0 0.0
    %1410 = vmatprep.subr.mxu0 0.0
    %1411 = vmatpush1.msra.mxu0 0.0
    %1412 = vmatprep.subr.mxu0 0.0
    %1413 = vmatpush1.msra.mxu0 0.0
    %1414 = vmatprep.subr.mxu0 0.0
    %1415 = vmatpush1.msra.mxu0 0.0
    %1416 = vmatprep.subr.mxu0 0.0
    %1417 = vmatpush1.msra.mxu0 0.0
    %1418 = vmatprep.subr.mxu0 0.0
    %1419 = vmatpush1.msra.mxu0 0.0
    %1420 = vmatprep.subr.mxu0 0.0
    %1421 = vmatpush1.msra.mxu0 0.0
    %1422 = vmatprep.subr.mxu0 0.0
    %1423 = vmatpush1.msra.mxu0 0.0
    %1424 = vmatprep.subr.mxu0 0.0
    %1425 = vmatpush1.msra.mxu0 0.0
    %1426 = vmatprep.subr.mxu0 0.0
    %1427 = vmatpush1.msra.mxu0 0.0
    %1428 = vmatprep.subr.mxu0 0.0
    %1429 = vmatpush1.msra.mxu0 0.0
    %1430 = vmatprep.subr.mxu0 0.0
    %1431 = vmatpush1.msra.mxu0 %v1393
    %1432 = vmatprep.subr.mxu0 0.0
    %1433 = vmatpush1.msra.mxu0 %v1391
    %1434 = vmatprep.subr.mxu0 0.0
    %1435 = vmatpush2.msra.mxu0 0.0
    %1436 = vmatprep.subr.mxu0 0.0
    %1437 = vmatpush2.msra.mxu0 0.0
    %1438 = vmatprep.subr.mxu0 0.0
    %1439 = vmatpush2.msra.mxu0 0.0
    %1440 = vmatprep.subr.mxu0 0.0
    %1441 = vmatpush2.msra.mxu0 0.0
    %1442 = vmatprep.subr.mxu0 0.0
    %1443 = vmatpush2.msra.mxu0 0.0
    %1444 = vmatprep.subr.mxu0 0.0
    %1445 = vmatpush2.msra.mxu0 0.0
    %1446 = vmatprep.subr.mxu0 0.0
    %1447 = vmatpush2.msra.mxu0 0.0
    %1448 = vmatprep.subr.mxu0 0.0
    %1449 = vmatpush2.msra.mxu0 0.0
    %1450 = vmatprep.subr.mxu0 0.0
    %1451 = vmatpush2.msra.mxu0 0.0
    %1452 = vmatprep.subr.mxu0 0.0
    %1453 = vmatpush2.msra.mxu0 0.0
    %1454 = vmatprep.subr.mxu0 0.0
    %1455 = vmatpush2.msra.mxu0 0.0
    %1456 = vmatprep.subr.mxu0 0.0
    %1457 = vmatpush2.msra.mxu0 0.0
    %1458 = vmatprep.subr.mxu0 0.0
    %1459 = vmatpush2.msra.mxu0 0.0
    %1460 = vmatprep.subr.mxu0 0.0
    %1461 = vmatpush2.msra.mxu0 0.0
    %1462 = vmatprep.subr.mxu0 0.0
    %1463 = vmatpush2.msra.mxu0 0.0
    %1464 = vmatprep.subr.mxu0 0.0
    %1465 = vmatpush2.msra.mxu0 0.0
    %1466 = vmatprep.mubr.f32.mxu0 0.0
    %1467 = vmatmul.mubr.f32.gmra.mxu0 %v1397
    %v1468 = vpop.f32.mrf.mxu0
    %v1469 = vadd.f32 0.0, %v1468
    %v1470 = vpop.f32.mrf.mxu0
    %1471 = vmatprep.mubr.f32.mxu0 0.0
    %1472 = vmatmul.mubr.f32.gmra.mxu0 %v1400
    %v1473 = vpop.f32.mrf.mxu0
    %v1474 = vadd.f32 0.0, %v1473
    %v1475 = vpop.f32.mrf.mxu0
    %1476 = vdwg.mxu0
    %1477 = vrot.lane.b32.xlu0 %v285, 64
    %v1478 = vpop.permute.xlu0 %1477
    %1479 = vrot.lane.b32.xlu0 %v287, 64
    %v1480 = vpop.permute.xlu0 %1479
    %v1484 = vsel %vm1039, %v1206, 0
    %v1487 = vsel %vm1039, %v1207, 0
    %1489 = vmatprep.subr.mxu0 0.0
    %1490 = vmatpush1.msra.mxu0 0.0
    %1491 = vmatprep.subr.mxu0 0.0
    %1492 = vmatpush1.msra.mxu0 0.0
    %1493 = vmatprep.subr.mxu0 0.0
    %1494 = vmatpush1.msra.mxu0 0.0
    %1495 = vmatprep.subr.mxu0 0.0
    %1496 = vmatpush1.msra.mxu0 0.0
    %1497 = vmatprep.subr.mxu0 0.0
    %1498 = vmatpush1.msra.mxu0 0.0
    %1499 = vmatprep.subr.mxu0 0.0
    %1500 = vmatpush1.msra.mxu0 0.0
    %1501 = vmatprep.subr.mxu0 0.0
    %1502 = vmatpush1.msra.mxu0 0.0
    %1503 = vmatprep.subr.mxu0 0.0
    %1504 = vmatpush1.msra.mxu0 0.0
    %1505 = vmatprep.subr.mxu0 0.0
    %1506 = vmatpush1.msra.mxu0 0.0
    %1507 = vmatprep.subr.mxu0 0.0
    %1508 = vmatpush1.msra.mxu0 0.0
    %1509 = vmatprep.subr.mxu0 0.0
    %1510 = vmatpush1.msra.mxu0 0.0
    %1511 = vmatprep.subr.mxu0 0.0
    %1512 = vmatpush1.msra.mxu0 0.0
    %1513 = vmatprep.subr.mxu0 0.0
    %1514 = vmatpush1.msra.mxu0 0.0
    %1515 = vmatprep.subr.mxu0 0.0
    %1516 = vmatpush1.msra.mxu0 0.0
    %1517 = vmatprep.subr.mxu0 0.0
    %1518 = vmatpush1.msra.mxu0 %v1480
    %1519 = vmatprep.subr.mxu0 0.0
    %1520 = vmatpush1.msra.mxu0 %v1478
    %1521 = vmatprep.subr.mxu0 0.0
    %1522 = vmatpush2.msra.mxu0 0.0
    %1523 = vmatprep.subr.mxu0 0.0
    %1524 = vmatpush2.msra.mxu0 0.0
    %1525 = vmatprep.subr.mxu0 0.0
    %1526 = vmatpush2.msra.mxu0 0.0
    %1527 = vmatprep.subr.mxu0 0.0
    %1528 = vmatpush2.msra.mxu0 0.0
    %1529 = vmatprep.subr.mxu0 0.0
    %1530 = vmatpush2.msra.mxu0 0.0
    %1531 = vmatprep.subr.mxu0 0.0
    %1532 = vmatpush2.msra.mxu0 0.0
    %1533 = vmatprep.subr.mxu0 0.0
    %1534 = vmatpush2.msra.mxu0 0.0
    %1535 = vmatprep.subr.mxu0 0.0
    %1536 = vmatpush2.msra.mxu0 0.0
    %1537 = vmatprep.subr.mxu0 0.0
    %1538 = vmatpush2.msra.mxu0 0.0
    %1539 = vmatprep.subr.mxu0 0.0
    %1540 = vmatpush2.msra.mxu0 0.0
    %1541 = vmatprep.subr.mxu0 0.0
    %1542 = vmatpush2.msra.mxu0 0.0
    %1543 = vmatprep.subr.mxu0 0.0
    %1544 = vmatpush2.msra.mxu0 0.0
    %1545 = vmatprep.subr.mxu0 0.0
    %1546 = vmatpush2.msra.mxu0 0.0
    %1547 = vmatprep.subr.mxu0 0.0
    %1548 = vmatpush2.msra.mxu0 0.0
    %1549 = vmatprep.subr.mxu0 0.0
    %1550 = vmatpush2.msra.mxu0 0.0
    %1551 = vmatprep.subr.mxu0 0.0
    %1552 = vmatpush2.msra.mxu0 0.0
    %1553 = vmatprep.mubr.f32.mxu0 0.0
    %1554 = vmatmul.mubr.f32.gmra.mxu0 %v1484
    %v1555 = vpop.f32.mrf.mxu0
    %v1556 = vadd.f32 0.0, %v1555
    %v1557 = vpop.f32.mrf.mxu0
    %1558 = vmatprep.mubr.f32.mxu0 0.0
    %1559 = vmatmul.mubr.f32.gmra.mxu0 %v1487
    %v1560 = vpop.f32.mrf.mxu0
    %v1561 = vadd.f32 0.0, %v1560
    %v1562 = vpop.f32.mrf.mxu0
    %1563 = vdwg.mxu0
    %1564 = vrot.lane.b32.xlu0 %v262, 64
    %v1565 = vpop.permute.xlu0 %1564
    %1566 = vrot.lane.b32.xlu0 %v267, 64
    %v1567 = vpop.permute.xlu0 %1566
    %v1571 = vsel %vm1039, %v1208, 0
    %v1574 = vsel %vm1039, %v1209, 0
    %1576 = vmatprep.subr.mxu0 0.0
    %1577 = vmatpush1.msra.mxu0 0.0
    %1578 = vmatprep.subr.mxu0 0.0
    %1579 = vmatpush1.msra.mxu0 0.0
    %1580 = vmatprep.subr.mxu0 0.0
    %1581 = vmatpush1.msra.mxu0 0.0
    %1582 = vmatprep.subr.mxu0 0.0
    %1583 = vmatpush1.msra.mxu0 0.0
    %1584 = vmatprep.subr.mxu0 0.0
    %1585 = vmatpush1.msra.mxu0 0.0
    %1586 = vmatprep.subr.mxu0 0.0
    %1587 = vmatpush1.msra.mxu0 0.0
    %1588 = vmatprep.subr.mxu0 0.0
    %1589 = vmatpush1.msra.mxu0 0.0
    %1590 = vmatprep.subr.mxu0 0.0
    %1591 = vmatpush1.msra.mxu0 0.0
    %1592 = vmatprep.subr.mxu0 0.0
    %1593 = vmatpush1.msra.mxu0 0.0
    %1594 = vmatprep.subr.mxu0 0.0
    %1595 = vmatpush1.msra.mxu0 0.0
    %1596 = vmatprep.subr.mxu0 0.0
    %1597 = vmatpush1.msra.mxu0 0.0
    %1598 = vmatprep.subr.mxu0 0.0
    %1599 = vmatpush1.msra.mxu0 0.0
    %1600 = vmatprep.subr.mxu0 0.0
    %1601 = vmatpush1.msra.mxu0 0.0
    %1602 = vmatprep.subr.mxu0 0.0
    %1603 = vmatpush1.msra.mxu0 0.0
    %1604 = vmatprep.subr.mxu0 0.0
    %1605 = vmatpush1.msra.mxu0 %v1567
    %1606 = vmatprep.subr.mxu0 0.0
    %1607 = vmatpush1.msra.mxu0 %v1565
    %1608 = vmatprep.subr.mxu0 0.0
    %1609 = vmatpush2.msra.mxu0 0.0
    %1610 = vmatprep.subr.mxu0 0.0
    %1611 = vmatpush2.msra.mxu0 0.0
    %1612 = vmatprep.subr.mxu0 0.0
    %1613 = vmatpush2.msra.mxu0 0.0
    %1614 = vmatprep.subr.mxu0 0.0
    %1615 = vmatpush2.msra.mxu0 0.0
    %1616 = vmatprep.subr.mxu0 0.0
    %1617 = vmatpush2.msra.mxu0 0.0
    %1618 = vmatprep.subr.mxu0 0.0
    %1619 = vmatpush2.msra.mxu0 0.0
    %1620 = vmatprep.subr.mxu0 0.0
    %1621 = vmatpush2.msra.mxu0 0.0
    %1622 = vmatprep.subr.mxu0 0.0
    %1623 = vmatpush2.msra.mxu0 0.0
    %1624 = vmatprep.subr.mxu0 0.0
    %1625 = vmatpush2.msra.mxu0 0.0
    %1626 = vmatprep.subr.mxu0 0.0
    %1627 = vmatpush2.msra.mxu0 0.0
    %1628 = vmatprep.subr.mxu0 0.0
    %1629 = vmatpush2.msra.mxu0 0.0
    %1630 = vmatprep.subr.mxu0 0.0
    %1631 = vmatpush2.msra.mxu0 0.0
    %1632 = vmatprep.subr.mxu0 0.0
    %1633 = vmatpush2.msra.mxu0 0.0
    %1634 = vmatprep.subr.mxu0 0.0
    %1635 = vmatpush2.msra.mxu0 0.0
    %1636 = vmatprep.subr.mxu0 0.0
    %1637 = vmatpush2.msra.mxu0 0.0
    %1638 = vmatprep.subr.mxu0 0.0
    %1639 = vmatpush2.msra.mxu0 0.0
    %1640 = vmatprep.mubr.f32.mxu0 0.0
    %1641 = vmatmul.mubr.f32.gmra.mxu0 %v1571
    %v1642 = vpop.f32.mrf.mxu0
    %v1643 = vadd.f32 0.0, %v1642
    %v1644 = vpop.f32.mrf.mxu0
    %1645 = vmatprep.mubr.f32.mxu0 0.0
    %1646 = vmatmul.mubr.f32.gmra.mxu0 %v1574
    %v1647 = vpop.f32.mrf.mxu0
    %v1648 = vadd.f32 0.0, %v1647
    %v1649 = vpop.f32.mrf.mxu0
    %1650 = vdwg.mxu0
    %1651 = vrot.lane.b32.xlu0 %v293, 64
    %v1652 = vpop.permute.xlu0 %1651
    %1653 = vrot.lane.b32.xlu0 %v295, 64
    %v1654 = vpop.permute.xlu0 %1653
    %v1658 = vsel %vm1039, %v1210, 0
    %v1661 = vsel %vm1039, %v1211, 0
    %1663 = vmatprep.subr.mxu0 0.0
    %1664 = vmatpush1.msra.mxu0 0.0
    %1665 = vmatprep.subr.mxu0 0.0
    %1666 = vmatpush1.msra.mxu0 0.0
    %1667 = vmatprep.subr.mxu0 0.0
    %1668 = vmatpush1.msra.mxu0 0.0
    %1669 = vmatprep.subr.mxu0 0.0
    %1670 = vmatpush1.msra.mxu0 0.0
    %1671 = vmatprep.subr.mxu0 0.0
    %1672 = vmatpush1.msra.mxu0 0.0
    %1673 = vmatprep.subr.mxu0 0.0
    %1674 = vmatpush1.msra.mxu0 0.0
    %1675 = vmatprep.subr.mxu0 0.0
    %1676 = vmatpush1.msra.mxu0 0.0
    %1677 = vmatprep.subr.mxu0 0.0
    %1678 = vmatpush1.msra.mxu0 0.0
    %1679 = vmatprep.subr.mxu0 0.0
    %1680 = vmatpush1.msra.mxu0 0.0
    %1681 = vmatprep.subr.mxu0 0.0
    %1682 = vmatpush1.msra.mxu0 0.0
    %1683 = vmatprep.subr.mxu0 0.0
    %1684 = vmatpush1.msra.mxu0 0.0
    %1685 = vmatprep.subr.mxu0 0.0
    %1686 = vmatpush1.msra.mxu0 0.0
    %1687 = vmatprep.subr.mxu0 0.0
    %1688 = vmatpush1.msra.mxu0 0.0
    %1689 = vmatprep.subr.mxu0 0.0
    %1690 = vmatpush1.msra.mxu0 0.0
    %1691 = vmatprep.subr.mxu0 0.0
    %1692 = vmatpush1.msra.mxu0 %v1654
    %1693 = vmatprep.subr.mxu0 0.0
    %1694 = vmatpush1.msra.mxu0 %v1652
    %1695 = vmatprep.subr.mxu0 0.0
    %1696 = vmatpush2.msra.mxu0 0.0
    %1697 = vmatprep.subr.mxu0 0.0
    %1698 = vmatpush2.msra.mxu0 0.0
    %1699 = vmatprep.subr.mxu0 0.0
    %1700 = vmatpush2.msra.mxu0 0.0
    %1701 = vmatprep.subr.mxu0 0.0
    %1702 = vmatpush2.msra.mxu0 0.0
    %1703 = vmatprep.subr.mxu0 0.0
    %1704 = vmatpush2.msra.mxu0 0.0
    %1705 = vmatprep.subr.mxu0 0.0
    %1706 = vmatpush2.msra.mxu0 0.0
    %1707 = vmatprep.subr.mxu0 0.0
    %1708 = vmatpush2.msra.mxu0 0.0
    %1709 = vmatprep.subr.mxu0 0.0
    %1710 = vmatpush2.msra.mxu0 0.0
    %1711 = vmatprep.subr.mxu0 0.0
    %1712 = vmatpush2.msra.mxu0 0.0
    %1713 = vmatprep.subr.mxu0 0.0
    %1714 = vmatpush2.msra.mxu0 0.0
    %1715 = vmatprep.subr.mxu0 0.0
    %1716 = vmatpush2.msra.mxu0 0.0
    %1717 = vmatprep.subr.mxu0 0.0
    %1718 = vmatpush2.msra.mxu0 0.0
    %1719 = vmatprep.subr.mxu0 0.0
    %1720 = vmatpush2.msra.mxu0 0.0
    %1721 = vmatprep.subr.mxu0 0.0
    %1722 = vmatpush2.msra.mxu0 0.0
    %1723 = vmatprep.subr.mxu0 0.0
    %1724 = vmatpush2.msra.mxu0 0.0
    %1725 = vmatprep.subr.mxu0 0.0
    %1726 = vmatpush2.msra.mxu0 0.0
    %1727 = vmatprep.mubr.f32.mxu0 0.0
    %1728 = vmatmul.mubr.f32.gmra.mxu0 %v1658
    %v1729 = vpop.f32.mrf.mxu0
    %v1730 = vadd.f32 0.0, %v1729
    %v1731 = vpop.f32.mrf.mxu0
    %1732 = vmatprep.mubr.f32.mxu0 0.0
    %1733 = vmatmul.mubr.f32.gmra.mxu0 %v1661
    %v1734 = vpop.f32.mrf.mxu0
    %v1735 = vadd.f32 0.0, %v1734
    %v1736 = vpop.f32.mrf.mxu0
    %1737 = vdwg.mxu0
    %1738 = vrot.lane.b32.xlu0 %v299, 64
    %v1739 = vpop.permute.xlu0 %1738
    %1740 = vrot.lane.b32.xlu0 %v301, 64
    %v1741 = vpop.permute.xlu0 %1740
    %v1745 = vsel %vm1039, %v1212, 0
    %v1748 = vsel %vm1039, %v1213, 0
    %1750 = vmatprep.subr.mxu0 0.0
    %1751 = vmatpush1.msra.mxu0 0.0
    %1752 = vmatprep.subr.mxu0 0.0
    %1753 = vmatpush1.msra.mxu0 0.0
    %1754 = vmatprep.subr.mxu0 0.0
    %1755 = vmatpush1.msra.mxu0 0.0
    %1756 = vmatprep.subr.mxu0 0.0
    %1757 = vmatpush1.msra.mxu0 0.0
    %1758 = vmatprep.subr.mxu0 0.0
    %1759 = vmatpush1.msra.mxu0 0.0
    %1760 = vmatprep.subr.mxu0 0.0
    %1761 = vmatpush1.msra.mxu0 0.0
    %1762 = vmatprep.subr.mxu0 0.0
    %1763 = vmatpush1.msra.mxu0 0.0
    %1764 = vmatprep.subr.mxu0 0.0
    %1765 = vmatpush1.msra.mxu0 0.0
    %1766 = vmatprep.subr.mxu0 0.0
    %1767 = vmatpush1.msra.mxu0 0.0
    %1768 = vmatprep.subr.mxu0 0.0
    %1769 = vmatpush1.msra.mxu0 0.0
    %1770 = vmatprep.subr.mxu0 0.0
    %1771 = vmatpush1.msra.mxu0 0.0
    %1772 = vmatprep.subr.mxu0 0.0
    %1773 = vmatpush1.msra.mxu0 0.0
    %1774 = vmatprep.subr.mxu0 0.0
    %1775 = vmatpush1.msra.mxu0 0.0
    %1776 = vmatprep.subr.mxu0 0.0
    %1777 = vmatpush1.msra.mxu0 0.0
    %1778 = vmatprep.subr.mxu0 0.0
    %1779 = vmatpush1.msra.mxu0 %v1741
    %1780 = vmatprep.subr.mxu0 0.0
    %1781 = vmatpush1.msra.mxu0 %v1739
    %1782 = vmatprep.subr.mxu0 0.0
    %1783 = vmatpush2.msra.mxu0 0.0
    %1784 = vmatprep.subr.mxu0 0.0
    %1785 = vmatpush2.msra.mxu0 0.0
    %1786 = vmatprep.subr.mxu0 0.0
    %1787 = vmatpush2.msra.mxu0 0.0
    %1788 = vmatprep.subr.mxu0 0.0
    %1789 = vmatpush2.msra.mxu0 0.0
    %1790 = vmatprep.subr.mxu0 0.0
    %1791 = vmatpush2.msra.mxu0 0.0
    %1792 = vmatprep.subr.mxu0 0.0
    %1793 = vmatpush2.msra.mxu0 0.0
    %1794 = vmatprep.subr.mxu0 0.0
    %1795 = vmatpush2.msra.mxu0 0.0
    %1796 = vmatprep.subr.mxu0 0.0
    %1797 = vmatpush2.msra.mxu0 0.0
    %1798 = vmatprep.subr.mxu0 0.0
    %1799 = vmatpush2.msra.mxu0 0.0
    %1800 = vmatprep.subr.mxu0 0.0
    %1801 = vmatpush2.msra.mxu0 0.0
    %1802 = vmatprep.subr.mxu0 0.0
    %1803 = vmatpush2.msra.mxu0 0.0
    %1804 = vmatprep.subr.mxu0 0.0
    %1805 = vmatpush2.msra.mxu0 0.0
    %1806 = vmatprep.subr.mxu0 0.0
    %1807 = vmatpush2.msra.mxu0 0.0
    %1808 = vmatprep.subr.mxu0 0.0
    %1809 = vmatpush2.msra.mxu0 0.0
    %1810 = vmatprep.subr.mxu0 0.0
    %1811 = vmatpush2.msra.mxu0 0.0
    %1812 = vmatprep.subr.mxu0 0.0
    %1813 = vmatpush2.msra.mxu0 0.0
    %1814 = vmatprep.mubr.f32.mxu0 0.0
    %1815 = vmatmul.mubr.f32.gmra.mxu0 %v1745
    %v1816 = vpop.f32.mrf.mxu0
    %v1817 = vadd.f32 0.0, %v1816
    %v1818 = vpop.f32.mrf.mxu0
    %1819 = vmatprep.mubr.f32.mxu0 0.0
    %1820 = vmatmul.mubr.f32.gmra.mxu0 %v1748
    %v1821 = vpop.f32.mrf.mxu0
    %v1822 = vadd.f32 0.0, %v1821
    %v1823 = vpop.f32.mrf.mxu0
    %1824 = vdwg.mxu0
    %1825 = vrot.lane.b32.xlu0 %v305, 64
    %v1826 = vpop.permute.xlu0 %1825
    %1827 = vrot.lane.b32.xlu0 %v307, 64
    %v1828 = vpop.permute.xlu0 %1827
    %v1832 = vsel %vm1039, %v1214, 0
    %v1835 = vsel %vm1039, %v1215, 0
    %1837 = vmatprep.subr.mxu0 0.0
    %1838 = vmatpush1.msra.mxu0 0.0
    %1839 = vmatprep.subr.mxu0 0.0
    %1840 = vmatpush1.msra.mxu0 0.0
    %1841 = vmatprep.subr.mxu0 0.0
    %1842 = vmatpush1.msra.mxu0 0.0
    %1843 = vmatprep.subr.mxu0 0.0
    %1844 = vmatpush1.msra.mxu0 0.0
    %1845 = vmatprep.subr.mxu0 0.0
    %1846 = vmatpush1.msra.mxu0 0.0
    %1847 = vmatprep.subr.mxu0 0.0
    %1848 = vmatpush1.msra.mxu0 0.0
    %1849 = vmatprep.subr.mxu0 0.0
    %1850 = vmatpush1.msra.mxu0 0.0
    %1851 = vmatprep.subr.mxu0 0.0
    %1852 = vmatpush1.msra.mxu0 0.0
    %1853 = vmatprep.subr.mxu0 0.0
    %1854 = vmatpush1.msra.mxu0 0.0
    %1855 = vmatprep.subr.mxu0 0.0
    %1856 = vmatpush1.msra.mxu0 0.0
    %1857 = vmatprep.subr.mxu0 0.0
    %1858 = vmatpush1.msra.mxu0 0.0
    %1859 = vmatprep.subr.mxu0 0.0
    %1860 = vmatpush1.msra.mxu0 0.0
    %1861 = vmatprep.subr.mxu0 0.0
    %1862 = vmatpush1.msra.mxu0 0.0
    %1863 = vmatprep.subr.mxu0 0.0
    %1864 = vmatpush1.msra.mxu0 0.0
    %1865 = vmatprep.subr.mxu0 0.0
    %1866 = vmatpush1.msra.mxu0 %v1828
    %1867 = vmatprep.subr.mxu0 0.0
    %1868 = vmatpush1.msra.mxu0 %v1826
    %1869 = vmatprep.subr.mxu0 0.0
    %1870 = vmatpush2.msra.mxu0 0.0
    %1871 = vmatprep.subr.mxu0 0.0
    %1872 = vmatpush2.msra.mxu0 0.0
    %1873 = vmatprep.subr.mxu0 0.0
    %1874 = vmatpush2.msra.mxu0 0.0
    %1875 = vmatprep.subr.mxu0 0.0
    %1876 = vmatpush2.msra.mxu0 0.0
    %1877 = vmatprep.subr.mxu0 0.0
    %1878 = vmatpush2.msra.mxu0 0.0
    %1879 = vmatprep.subr.mxu0 0.0
    %1880 = vmatpush2.msra.mxu0 0.0
    %1881 = vmatprep.subr.mxu0 0.0
    %1882 = vmatpush2.msra.mxu0 0.0
    %1883 = vmatprep.subr.mxu0 0.0
    %1884 = vmatpush2.msra.mxu0 0.0
    %1885 = vmatprep.subr.mxu0 0.0
    %1886 = vmatpush2.msra.mxu0 0.0
    %1887 = vmatprep.subr.mxu0 0.0
    %1888 = vmatpush2.msra.mxu0 0.0
    %1889 = vmatprep.subr.mxu0 0.0
    %1890 = vmatpush2.msra.mxu0 0.0
    %1891 = vmatprep.subr.mxu0 0.0
    %1892 = vmatpush2.msra.mxu0 0.0
    %1893 = vmatprep.subr.mxu0 0.0
    %1894 = vmatpush2.msra.mxu0 0.0
    %1895 = vmatprep.subr.mxu0 0.0
    %1896 = vmatpush2.msra.mxu0 0.0
    %1897 = vmatprep.subr.mxu0 0.0
    %1898 = vmatpush2.msra.mxu0 0.0
    %1899 = vmatprep.subr.mxu0 0.0
    %1900 = vmatpush2.msra.mxu0 0.0
    %1901 = vmatprep.mubr.f32.mxu0 0.0
    %1902 = vmatmul.mubr.f32.gmra.mxu0 %v1832
    %v1903 = vpop.f32.mrf.mxu0
    %v1904 = vadd.f32 0.0, %v1903
    %v1905 = vpop.f32.mrf.mxu0
    %1906 = vmatprep.mubr.f32.mxu0 0.0
    %1907 = vmatmul.mubr.f32.gmra.mxu0 %v1835
    %v1908 = vpop.f32.mrf.mxu0
    %v1909 = vadd.f32 0.0, %v1908
    %v1910 = vpop.f32.mrf.mxu0
    %1911 = vdwg.mxu0
    %1914 = vrot.lane.b32.xlu0 %v1382, 8
    %v1915 = vpop.permute.xlu0 %1914
    %1916 = vrot.lane.b32.xlu0 %v1387, 8
    %v1917 = vpop.permute.xlu0 %1916
    %1922 = vrot.lane.b32.xlu0 %v1469, 16
    %v1923 = vpop.permute.xlu0 %1922
    %1924 = vrot.lane.b32.xlu0 %v1474, 16
    %v1925 = vpop.permute.xlu0 %1924
    %1930 = vrot.lane.b32.xlu0 %v1556, 24
    %v1931 = vpop.permute.xlu0 %1930
    %1932 = vrot.lane.b32.xlu0 %v1561, 24
    %v1933 = vpop.permute.xlu0 %1932
    %v1936 = vsel %vm330, %v1295, %v1915
    %v1937 = vsel %vm330, %v1300, %v1917
    %v1938 = vsel %vm1039, %v1936, %v1923
    %v1939 = vsel %vm1039, %v1937, %v1925
    %vm1940 = vcmask 195584
    %v1941 = vsel %vm1940, %v1938, %v1931
    %v1942 = vsel %vm1940, %v1939, %v1933
    %1945 = vrot.lane.b32.xlu0 %v1730, 8
    %v1946 = vpop.permute.xlu0 %1945
    %1947 = vrot.lane.b32.xlu0 %v1735, 8
    %v1948 = vpop.permute.xlu0 %1947
    %1953 = vrot.lane.b32.xlu0 %v1817, 16
    %v1954 = vpop.permute.xlu0 %1953
    %1955 = vrot.lane.b32.xlu0 %v1822, 16
    %v1956 = vpop.permute.xlu0 %1955
    %1961 = vrot.lane.b32.xlu0 %v1904, 24
    %v1962 = vpop.permute.xlu0 %1961
    %1963 = vrot.lane.b32.xlu0 %v1909, 24
    %v1964 = vpop.permute.xlu0 %1963
    %v1967 = vsel %vm330, %v1643, %v1946
    %v1968 = vsel %vm330, %v1648, %v1948
    %v1969 = vsel %vm1039, %v1967, %v1954
    %v1970 = vsel %vm1039, %v1968, %v1956
    %v1971 = vsel %vm1940, %v1969, %v1962
    %v1972 = vsel %vm1940, %v1970, %v1964
    %v1973 = vld [vmem:[%s5] sm:$0xff]
    %v1974 = vld [vmem:[%s5 + $0x8] sm:$0xff]
    %v1975 = vld [vmem:[%s5 + $0x10] sm:$0xff]
    %v1976 = vld [vmem:[%s5 + $0x18] sm:$0xff]
    %v1977 = vld [vmem:[%s6] sm:$0x1]
    %v1979 = vlaneseq
    %v1980 = vshrl.u32 %v1979, 7
    %v1981 = vsub.s32 0, %v1980
    %v1982 = vrot.slane %v1977, %v1981
    %v1985 = vsel %vm88, %v1941, 0
    %v1988 = vsel %vm88, %v1942, 0
    %v1991 = vsel %vm88, %v1971, 0
    %v1994 = vsel %vm88, %v1972, 0
    %1996 = vmatprep.subr.mxu0 0.0
    %1997 = vmatpush1.msra.mxu0 0.0
    %1998 = vmatprep.subr.mxu0 0.0
    %1999 = vmatpush1.msra.mxu0 0.0
    %2000 = vmatprep.subr.mxu0 0.0
    %2001 = vmatpush1.msra.mxu0 0.0
    %2002 = vmatprep.subr.mxu0 0.0
    %2003 = vmatpush1.msra.mxu0 0.0
    %2004 = vmatprep.subr.mxu0 0.0
    %2005 = vmatpush1.msra.mxu0 0.0
    %2006 = vmatprep.subr.mxu0 0.0
    %2007 = vmatpush1.msra.mxu0 0.0
    %2008 = vmatprep.subr.mxu0 0.0
    %2009 = vmatpush1.msra.mxu0 0.0
    %2010 = vmatprep.subr.mxu0 0.0
    %2011 = vmatpush1.msra.mxu0 0.0
    %2012 = vmatprep.subr.mxu0 0.0
    %2013 = vmatpush1.msra.mxu0 0.0
    %2014 = vmatprep.subr.mxu0 0.0
    %2015 = vmatpush1.msra.mxu0 0.0
    %2016 = vmatprep.subr.mxu0 0.0
    %2017 = vmatpush1.msra.mxu0 0.0
    %2018 = vmatprep.subr.mxu0 0.0
    %2019 = vmatpush1.msra.mxu0 0.0
    %2020 = vmatprep.subr.mxu0 0.0
    %2021 = vmatpush1.msra.mxu0 %v1976
    %2022 = vmatprep.subr.mxu0 0.0
    %2023 = vmatpush1.msra.mxu0 %v1975
    %2024 = vmatprep.subr.mxu0 0.0
    %2025 = vmatpush1.msra.mxu0 %v1974
    %2026 = vmatprep.subr.mxu0 0.0
    %2027 = vmatpush1.msra.mxu0 %v1973
    %2028 = vmatprep.subr.mxu0 0.0
    %2029 = vmatpush2.msra.mxu0 0.0
    %2030 = vmatprep.subr.mxu0 0.0
    %2031 = vmatpush2.msra.mxu0 0.0
    %2032 = vmatprep.subr.mxu0 0.0
    %2033 = vmatpush2.msra.mxu0 0.0
    %2034 = vmatprep.subr.mxu0 0.0
    %2035 = vmatpush2.msra.mxu0 0.0
    %2036 = vmatprep.subr.mxu0 0.0
    %2037 = vmatpush2.msra.mxu0 0.0
    %2038 = vmatprep.subr.mxu0 0.0
    %2039 = vmatpush2.msra.mxu0 0.0
    %2040 = vmatprep.subr.mxu0 0.0
    %2041 = vmatpush2.msra.mxu0 0.0
    %2042 = vmatprep.subr.mxu0 0.0
    %2043 = vmatpush2.msra.mxu0 0.0
    %2044 = vmatprep.subr.mxu0 0.0
    %2045 = vmatpush2.msra.mxu0 0.0
    %2046 = vmatprep.subr.mxu0 0.0
    %2047 = vmatpush2.msra.mxu0 0.0
    %2048 = vmatprep.subr.mxu0 0.0
    %2049 = vmatpush2.msra.mxu0 0.0
    %2050 = vmatprep.subr.mxu0 0.0
    %2051 = vmatpush2.msra.mxu0 0.0
    %2052 = vmatprep.subr.mxu0 0.0
    %2053 = vmatpush2.msra.mxu0 0.0
    %2054 = vmatprep.subr.mxu0 0.0
    %2055 = vmatpush2.msra.mxu0 0.0
    %2056 = vmatprep.subr.mxu0 0.0
    %2057 = vmatpush2.msra.mxu0 0.0
    %2058 = vmatprep.subr.mxu0 0.0
    %2059 = vmatpush2.msra.mxu0 0.0
    %2060 = vmatprep.mubr.f32.mxu0 0.0
    %2061 = vmatmul.mubr.f32.gmra.mxu0 %v1985
    %v2062 = vpop.f32.mrf.mxu0
    %v2063 = vadd.f32 %v1982, %v2062
    %v2064 = vpop.f32.mrf.mxu0
    %2065 = vmatprep.mubr.f32.mxu0 0.0
    %2066 = vmatmul.mubr.f32.gmra.mxu0 %v1988
    %v2067 = vpop.f32.mrf.mxu0
    %v2068 = vadd.f32 %v1982, %v2067
    %v2069 = vpop.f32.mrf.mxu0
    %2070 = vmatprep.mubr.f32.mxu0 0.0
    %2071 = vmatmul.mubr.f32.gmra.mxu0 %v1991
    %v2072 = vpop.f32.mrf.mxu0
    %v2073 = vadd.f32 %v1982, %v2072
    %v2074 = vpop.f32.mrf.mxu0
    %2075 = vmatprep.mubr.f32.mxu0 0.0
    %2076 = vmatmul.mubr.f32.gmra.mxu0 %v1994
    %v2077 = vpop.f32.mrf.mxu0
    %v2078 = vadd.f32 %v1982, %v2077
    %v2079 = vpop.f32.mrf.mxu0
    %2080 = vdwg.mxu0
    %v2081 = vadd.f32 %v82, %v2063
    %v2082 = vadd.f32 %v83, %v2068
    %v2083 = vadd.f32 %v84, %v2073
    %v2084 = vadd.f32 %v85, %v2078
    %v2085 = vld [vmem:[%s7] sm:$0x1]
    %v2086 = vld [vmem:[%s8] sm:$0x1]
    %v2087 = vsel %vm88, %v2081, 0.0
    %2088 = vadd.xlane.f32.xlu0 %v2087
    %v2089 = vpop.xlane.xlu0 %2088
    %v2090 = vsel %vm88, %v2082, 0.0
    %2091 = vadd.xlane.f32.xlu0 %v2090
    %v2092 = vpop.xlane.xlu0 %2091
    %v2093 = vsel %vm88, %v2083, 0.0
    %2094 = vadd.xlane.f32.xlu0 %v2093
    %v2095 = vpop.xlane.xlu0 %2094
    %v2096 = vsel %vm88, %v2084, 0.0
    %2097 = vadd.xlane.f32.xlu0 %v2096
    %v2098 = vpop.xlane.xlu0 %2097
    %v2099 = vmul.f32 %v2089, %v101
    %v2100 = vmul.f32 %v2092, %v101
    %v2101 = vmul.f32 %v2095, %v101
    %v2102 = vmul.f32 %v2098, %v101
    %v2103 = vsub.f32 %v2081, %v2099
    %v2104 = vsub.f32 %v2082, %v2100
    %v2105 = vsub.f32 %v2083, %v2101
    %v2106 = vsub.f32 %v2084, %v2102
    %v2107 = vmul.f32 %v2103, %v2103
    %v2108 = vmul.f32 %v2104, %v2104
    %v2109 = vmul.f32 %v2105, %v2105
    %v2110 = vmul.f32 %v2106, %v2106
    %v2111 = vsel %vm88, %v2107, 0.0
    %2112 = vadd.xlane.f32.xlu0 %v2111
    %v2113 = vpop.xlane.xlu0 %2112
    %v2114 = vsel %vm88, %v2108, 0.0
    %2115 = vadd.xlane.f32.xlu0 %v2114
    %v2116 = vpop.xlane.xlu0 %2115
    %v2117 = vsel %vm88, %v2109, 0.0
    %2118 = vadd.xlane.f32.xlu0 %v2117
    %v2119 = vpop.xlane.xlu0 %2118
    %v2120 = vsel %vm88, %v2110, 0.0
    %2121 = vadd.xlane.f32.xlu0 %v2120
    %v2122 = vpop.xlane.xlu0 %2121
    %v2123 = vmul.f32 %v2113, %v101
    %v2124 = vmul.f32 %v2116, %v101
    %v2125 = vmul.f32 %v2119, %v101
    %v2126 = vmul.f32 %v2122, %v101
    %v2127 = vadd.f32 %v2123, 1e-05
    %v2128 = vadd.f32 %v2124, 1e-05
    %v2129 = vadd.f32 %v2125, 1e-05
    %v2130 = vadd.f32 %v2126, 1e-05
    %v2131 = vrsqrt.pop %v2127
    %v2132 = vrsqrt.pop %v2128
    %v2133 = vrsqrt.pop %v2129
    %v2134 = vrsqrt.pop %v2130
    %v2135 = vmul.f32 %v2103, %v2131
    %v2136 = vmul.f32 %v2104, %v2132
    %v2137 = vmul.f32 %v2105, %v2133
    %v2138 = vmul.f32 %v2106, %v2134
    %v2140 = vlaneseq
    %v2141 = vshrl.u32 %v2140, 7
    %v2142 = vsub.s32 0, %v2141
    %v2143 = vrot.slane %v2085, %v2142
    %v2145 = vmul.f32 %v2135, %v2143
    %v2146 = vmul.f32 %v2136, %v2143
    %v2147 = vmul.f32 %v2137, %v2143
    %v2148 = vmul.f32 %v2138, %v2143
    %v2150 = vlaneseq
    %v2151 = vshrl.u32 %v2150, 7
    %v2152 = vsub.s32 0, %v2151
    %v2153 = vrot.slane %v2086, %v2152
    %v2155 = vadd.f32 %v2145, %v2153
    %v2156 = vadd.f32 %v2146, %v2153
    %v2157 = vadd.f32 %v2147, %v2153
    %v2158 = vadd.f32 %v2148, %v2153
    %v2159 = vld [vmem:[#allocation2] sm:$0xff]
    %v2160 = vld [vmem:[#allocation2 + $0x8] sm:$0xff]
    %v2161 = vld [vmem:[#allocation2 + $0x10] sm:$0xff]
    %v2162 = vld [vmem:[#allocation2 + $0x18] sm:$0xff]
    %v2163 = vld [vmem:[#allocation5] sm:$0x1]
    %v2165 = vlaneseq
    %v2166 = vshrl.u32 %v2165, 7
    %v2167 = vsub.s32 0, %v2166
    %v2168 = vrot.slane %v2163, %v2167
    %v2171 = vsel %vm88, %v2155, 0
    %v2174 = vsel %vm88, %v2156, 0
    %v2177 = vsel %vm88, %v2157, 0
    %v2180 = vsel %vm88, %v2158, 0
    %2182 = vmatprep.subr.mxu0 0.0
    %2183 = vmatpush1.msra.mxu0 0.0
    %2184 = vmatprep.subr.mxu0 0.0
    %2185 = vmatpush1.msra.mxu0 0.0
    %2186 = vmatprep.subr.mxu0 0.0
    %2187 = vmatpush1.msra.mxu0 0.0
    %2188 = vmatprep.subr.mxu0 0.0
    %2189 = vmatpush1.msra.mxu0 0.0
    %2190 = vmatprep.subr.mxu0 0.0
    %2191 = vmatpush1.msra.mxu0 0.0
    %2192 = vmatprep.subr.mxu0 0.0
    %2193 = vmatpush1.msra.mxu0 0.0
    %2194 = vmatprep.subr.mxu0 0.0
    %2195 = vmatpush1.msra.mxu0 0.0
    %2196 = vmatprep.subr.mxu0 0.0
    %2197 = vmatpush1.msra.mxu0 0.0
    %2198 = vmatprep.subr.mxu0 0.0
    %2199 = vmatpush1.msra.mxu0 0.0
    %2200 = vmatprep.subr.mxu0 0.0
    %2201 = vmatpush1.msra.mxu0 0.0
    %2202 = vmatprep.subr.mxu0 0.0
    %2203 = vmatpush1.msra.mxu0 0.0
    %2204 = vmatprep.subr.mxu0 0.0
    %2205 = vmatpush1.msra.mxu0 0.0
    %2206 = vmatprep.subr.mxu0 0.0
    %2207 = vmatpush1.msra.mxu0 %v2162
    %2208 = vmatprep.subr.mxu0 0.0
    %2209 = vmatpush1.msra.mxu0 %v2161
    %2210 = vmatprep.subr.mxu0 0.0
    %2211 = vmatpush1.msra.mxu0 %v2160
    %2212 = vmatprep.subr.mxu0 0.0
    %2213 = vmatpush1.msra.mxu0 %v2159
    %2214 = vmatprep.subr.mxu0 0.0
    %2215 = vmatpush2.msra.mxu0 0.0
    %2216 = vmatprep.subr.mxu0 0.0
    %2217 = vmatpush2.msra.mxu0 0.0
    %2218 = vmatprep.subr.mxu0 0.0
    %2219 = vmatpush2.msra.mxu0 0.0
    %2220 = vmatprep.subr.mxu0 0.0
    %2221 = vmatpush2.msra.mxu0 0.0
    %2222 = vmatprep.subr.mxu0 0.0
    %2223 = vmatpush2.msra.mxu0 0.0
    %2224 = vmatprep.subr.mxu0 0.0
    %2225 = vmatpush2.msra.mxu0 0.0
    %2226 = vmatprep.subr.mxu0 0.0
    %2227 = vmatpush2.msra.mxu0 0.0
    %2228 = vmatprep.subr.mxu0 0.0
    %2229 = vmatpush2.msra.mxu0 0.0
    %2230 = vmatprep.subr.mxu0 0.0
    %2231 = vmatpush2.msra.mxu0 0.0
    %2232 = vmatprep.subr.mxu0 0.0
    %2233 = vmatpush2.msra.mxu0 0.0
    %2234 = vmatprep.subr.mxu0 0.0
    %2235 = vmatpush2.msra.mxu0 0.0
    %2236 = vmatprep.subr.mxu0 0.0
    %2237 = vmatpush2.msra.mxu0 0.0
    %2238 = vmatprep.subr.mxu0 0.0
    %2239 = vmatpush2.msra.mxu0 0.0
    %2240 = vmatprep.subr.mxu0 0.0
    %2241 = vmatpush2.msra.mxu0 0.0
    %2242 = vmatprep.subr.mxu0 0.0
    %2243 = vmatpush2.msra.mxu0 0.0
    %2244 = vmatprep.subr.mxu0 0.0
    %2245 = vmatpush2.msra.mxu0 0.0
    %2246 = vmatprep.mubr.f32.mxu0 0.0
    %2247 = vmatmul.mubr.f32.gmra.mxu0 %v2171
    %v2248 = vpop.f32.mrf.mxu0
    %v2249 = vadd.f32 %v2168, %v2248
    %v2250 = vpop.f32.mrf.mxu0
    %2251 = vmatprep.mubr.f32.mxu0 0.0
    %2252 = vmatmul.mubr.f32.gmra.mxu0 %v2174
    %v2253 = vpop.f32.mrf.mxu0
    %v2254 = vadd.f32 %v2168, %v2253
    %v2255 = vpop.f32.mrf.mxu0
    %2256 = vmatprep.mubr.f32.mxu0 0.0
    %2257 = vmatmul.mubr.f32.gmra.mxu0 %v2177
    %v2258 = vpop.f32.mrf.mxu0
    %v2259 = vadd.f32 %v2168, %v2258
    %v2260 = vpop.f32.mrf.mxu0
    %2261 = vmatprep.mubr.f32.mxu0 0.0
    %2262 = vmatmul.mubr.f32.gmra.mxu0 %v2180
    %v2263 = vpop.f32.mrf.mxu0
    %v2264 = vadd.f32 %v2168, %v2263
    %v2265 = vpop.f32.mrf.mxu0
    %2266 = vdwg.mxu0
    %v2267 = vmul.f32 %v2249, 0.5
    %v2268 = vmul.f32 %v2254, 0.5
    %v2269 = vmul.f32 %v2259, 0.5
    %v2270 = vmul.f32 %v2264, 0.5
    %v2271 = vmul.f32 %v2249, 0.70710677
    %v2272 = vmul.f32 %v2254, 0.70710677
    %v2273 = vmul.f32 %v2259, 0.70710677
    %v2274 = vmul.f32 %v2264, 0.70710677
    %vm2275 = vcmp.ge.f32.partialorder %v2271, 0.0
    %vm2276 = vcmp.ge.f32.partialorder %v2272, 0.0
    %vm2277 = vcmp.ge.f32.partialorder %v2273, 0.0
    %vm2278 = vcmp.ge.f32.partialorder %v2274, 0.0
    %v2279 = vsel %vm2275, 1.0, -1.0
    %v2280 = vsel %vm2276, 1.0, -1.0
    %v2281 = vsel %vm2277, 1.0, -1.0
    %v2282 = vsel %vm2278, 1.0, -1.0
    %v2283 = vand.u32 2147483647, %v2271
    %v2284 = vand.u32 2147483647, %v2272
    %v2285 = vand.u32 2147483647, %v2273
    %v2286 = vand.u32 2147483647, %v2274
    %v2287 = vmul.f32 %v2283, 0.3275911
    %v2288 = vmul.f32 %v2284, 0.3275911
    %v2289 = vmul.f32 %v2285, 0.3275911
    %v2290 = vmul.f32 %v2286, 0.3275911
    %v2291 = vadd.f32 %v2287, 1.0
    %v2292 = vadd.f32 %v2288, 1.0
    %v2293 = vadd.f32 %v2289, 1.0
    %v2294 = vadd.f32 %v2290, 1.0
    %v2295 = vrcp.pop %v2291
    %v2296 = vmul.f32 1.0, %v2295
    %v2297 = vrcp.pop %v2292
    %v2298 = vmul.f32 1.0, %v2297
    %v2299 = vrcp.pop %v2293
    %v2300 = vmul.f32 1.0, %v2299
    %v2301 = vrcp.pop %v2294
    %v2302 = vmul.f32 1.0, %v2301
    %v2303 = vmul.f32 %v2296, 1.0614054
    %v2304 = vmul.f32 %v2298, 1.0614054
    %v2305 = vmul.f32 %v2300, 1.0614054
    %v2306 = vmul.f32 %v2302, 1.0614054
    %v2307 = vadd.f32 %v2303, -1.4531521
    %v2308 = vadd.f32 %v2304, -1.4531521
    %v2309 = vadd.f32 %v2305, -1.4531521
    %v2310 = vadd.f32 %v2306, -1.4531521
    %v2311 = vmul.f32 %v2307, %v2296
    %v2312 = vmul.f32 %v2308, %v2298
    %v2313 = vmul.f32 %v2309, %v2300
    %v2314 = vmul.f32 %v2310, %v2302
    %v2315 = vadd.f32 %v2311, 1.4214138
    %v2316 = vadd.f32 %v2312, 1.4214138
    %v2317 = vadd.f32 %v2313, 1.4214138
    %v2318 = vadd.f32 %v2314, 1.4214138
    %v2319 = vmul.f32 %v2315, %v2296
    %v2320 = vmul.f32 %v2316, %v2298
    %v2321 = vmul.f32 %v2317, %v2300
    %v2322 = vmul.f32 %v2318, %v2302
    %v2323 = vadd.f32 %v2319, -0.28449672
    %v2324 = vadd.f32 %v2320, -0.28449672
    %v2325 = vadd.f32 %v2321, -0.28449672
    %v2326 = vadd.f32 %v2322, -0.28449672
    %v2327 = vmul.f32 %v2323, %v2296
    %v2328 = vmul.f32 %v2324, %v2298
    %v2329 = vmul.f32 %v2325, %v2300
    %v2330 = vmul.f32 %v2326, %v2302
    %v2331 = vadd.f32 %v2327, 0.2548296
    %v2332 = vadd.f32 %v2328, 0.2548296
    %v2333 = vadd.f32 %v2329, 0.2548296
    %v2334 = vadd.f32 %v2330, 0.2548296
    %v2335 = vmul.f32 %v2331, %v2296
    %v2336 = vmul.f32 %v2332, %v2298
    %v2337 = vmul.f32 %v2333, %v2300
    %v2338 = vmul.f32 %v2334, %v2302
    %v2339 = vsub.f32 0.0, %v2283
    %v2340 = vsub.f32 0.0, %v2284
    %v2341 = vsub.f32 0.0, %v2285
    %v2342 = vsub.f32 0.0, %v2286
    %v2343 = vmul.f32 %v2339, %v2283
    %v2344 = vmul.f32 %v2340, %v2284
    %v2345 = vmul.f32 %v2341, %v2285
    %v2346 = vmul.f32 %v2342, %v2286
    %v2347 = vmul.f32 %v2343, 1.442695
    %v2348 = vpow.pop %v2347
    %v2349 = vmul.f32 %v2344, 1.442695
    %v2350 = vpow.pop %v2349
    %v2351 = vmul.f32 %v2345, 1.442695
    %v2352 = vpow.pop %v2351
    %v2353 = vmul.f32 %v2346, 1.442695
    %v2354 = vpow.pop %v2353
    %v2355 = vmul.f32 %v2335, %v2348
    %v2356 = vmul.f32 %v2336, %v2350
    %v2357 = vmul.f32 %v2337, %v2352
    %v2358 = vmul.f32 %v2338, %v2354
    %v2359 = vsub.f32 1.0, %v2355
    %v2360 = vsub.f32 1.0, %v2356
    %v2361 = vsub.f32 1.0, %v2357
    %v2362 = vsub.f32 1.0, %v2358
    %v2363 = vmul.f32 %v2279, %v2359
    %v2364 = vmul.f32 %v2280, %v2360
    %v2365 = vmul.f32 %v2281, %v2361
    %v2366 = vmul.f32 %v2282, %v2362
    %v2367 = vadd.f32 %v2363, 1.0
    %v2368 = vadd.f32 %v2364, 1.0
    %v2369 = vadd.f32 %v2365, 1.0
    %v2370 = vadd.f32 %v2366, 1.0
    %v2371 = vmul.f32 %v2267, %v2367
    %v2372 = vmul.f32 %v2268, %v2368
    %v2373 = vmul.f32 %v2269, %v2369
    %v2374 = vmul.f32 %v2270, %v2370
    %v2375 = vld [vmem:[%s11] sm:$0xff]
    %v2376 = vld [vmem:[%s11 + $0x8] sm:$0xff]
    %v2377 = vld [vmem:[%s11 + $0x10] sm:$0xff]
    %v2378 = vld [vmem:[%s11 + $0x18] sm:$0xff]
    %v2379 = vld [vmem:[%s11 + $0x20] sm:$0xff]
    %v2380 = vld [vmem:[%s11 + $0x28] sm:$0xff]
    %v2381 = vld [vmem:[%s11 + $0x30] sm:$0xff]
    %v2382 = vld [vmem:[%s11 + $0x38] sm:$0xff]
    %v2383 = vld [vmem:[#allocation7] sm:$0x1]
    %v2385 = vlaneseq
    %v2386 = vshrl.u32 %v2385, 7
    %v2387 = vsub.s32 0, %v2386
    %v2388 = vrot.slane %v2383, %v2387
    %vm2390 = vcmask 523264
    %v2392 = vsel %vm2390, %v2371, 0
    %v2395 = vsel %vm2390, %v2372, 0
    %v2398 = vsel %vm2390, %v2373, 0
    %v2401 = vsel %vm2390, %v2374, 0
    %2403 = vmatprep.subr.mxu0 0.0
    %2404 = vmatpush1.msra.mxu0 0.0
    %2405 = vmatprep.subr.mxu0 0.0
    %2406 = vmatpush1.msra.mxu0 0.0
    %2407 = vmatprep.subr.mxu0 0.0
    %2408 = vmatpush1.msra.mxu0 0.0
    %2409 = vmatprep.subr.mxu0 0.0
    %2410 = vmatpush1.msra.mxu0 0.0
    %2411 = vmatprep.subr.mxu0 0.0
    %2412 = vmatpush1.msra.mxu0 0.0
    %2413 = vmatprep.subr.mxu0 0.0
    %2414 = vmatpush1.msra.mxu0 0.0
    %2415 = vmatprep.subr.mxu0 0.0
    %2416 = vmatpush1.msra.mxu0 0.0
    %2417 = vmatprep.subr.mxu0 0.0
    %2418 = vmatpush1.msra.mxu0 0.0
    %2419 = vmatprep.subr.mxu0 0.0
    %2420 = vmatpush1.msra.mxu0 %v2382
    %2421 = vmatprep.subr.mxu0 0.0
    %2422 = vmatpush1.msra.mxu0 %v2381
    %2423 = vmatprep.subr.mxu0 0.0
    %2424 = vmatpush1.msra.mxu0 %v2380
    %2425 = vmatprep.subr.mxu0 0.0
    %2426 = vmatpush1.msra.mxu0 %v2379
    %2427 = vmatprep.subr.mxu0 0.0
    %2428 = vmatpush1.msra.mxu0 %v2378
    %2429 = vmatprep.subr.mxu0 0.0
    %2430 = vmatpush1.msra.mxu0 %v2377
    %2431 = vmatprep.subr.mxu0 0.0
    %2432 = vmatpush1.msra.mxu0 %v2376
    %2433 = vmatprep.subr.mxu0 0.0
    %2434 = vmatpush1.msra.mxu0 %v2375
    %2435 = vmatprep.subr.mxu0 0.0
    %2436 = vmatpush2.msra.mxu0 0.0
    %2437 = vmatprep.subr.mxu0 0.0
    %2438 = vmatpush2.msra.mxu0 0.0
    %2439 = vmatprep.subr.mxu0 0.0
    %2440 = vmatpush2.msra.mxu0 0.0
    %2441 = vmatprep.subr.mxu0 0.0
    %2442 = vmatpush2.msra.mxu0 0.0
    %2443 = vmatprep.subr.mxu0 0.0
    %2444 = vmatpush2.msra.mxu0 0.0
    %2445 = vmatprep.subr.mxu0 0.0
    %2446 = vmatpush2.msra.mxu0 0.0
    %2447 = vmatprep.subr.mxu0 0.0
    %2448 = vmatpush2.msra.mxu0 0.0
    %2449 = vmatprep.subr.mxu0 0.0
    %2450 = vmatpush2.msra.mxu0 0.0
    %2451 = vmatprep.subr.mxu0 0.0
    %2452 = vmatpush2.msra.mxu0 0.0
    %2453 = vmatprep.subr.mxu0 0.0
    %2454 = vmatpush2.msra.mxu0 0.0
    %2455 = vmatprep.subr.mxu0 0.0
    %2456 = vmatpush2.msra.mxu0 0.0
    %2457 = vmatprep.subr.mxu0 0.0
    %2458 = vmatpush2.msra.mxu0 0.0
    %2459 = vmatprep.subr.mxu0 0.0
    %2460 = vmatpush2.msra.mxu0 0.0
    %2461 = vmatprep.subr.mxu0 0.0
    %2462 = vmatpush2.msra.mxu0 0.0
    %2463 = vmatprep.subr.mxu0 0.0
    %2464 = vmatpush2.msra.mxu0 0.0
    %2465 = vmatprep.subr.mxu0 0.0
    %2466 = vmatpush2.msra.mxu0 0.0
    %2467 = vmatprep.mubr.f32.mxu0 0.0
    %2468 = vmatmul.mubr.f32.gmra.mxu0 %v2392
    %v2469 = vpop.f32.mrf.mxu0
    %v2470 = vadd.f32 %v2388, %v2469
    %v2471 = vpop.f32.mrf.mxu0
    %2472 = vmatprep.mubr.f32.mxu0 0.0
    %2473 = vmatmul.mubr.f32.gmra.mxu0 %v2395
    %v2474 = vpop.f32.mrf.mxu0
    %v2475 = vadd.f32 %v2388, %v2474
    %v2476 = vpop.f32.mrf.mxu0
    %2477 = vmatprep.mubr.f32.mxu0 0.0
    %2478 = vmatmul.mubr.f32.gmra.mxu0 %v2398
    %v2479 = vpop.f32.mrf.mxu0
    %v2480 = vadd.f32 %v2388, %v2479
    %v2481 = vpop.f32.mrf.mxu0
    %2482 = vmatprep.mubr.f32.mxu0 0.0
    %2483 = vmatmul.mubr.f32.gmra.mxu0 %v2401
    %v2484 = vpop.f32.mrf.mxu0
    %v2485 = vadd.f32 %v2388, %v2484
    %v2486 = vpop.f32.mrf.mxu0
    %2487 = vdwg.mxu0
    %v2488 = vadd.f32 %v2470, %v2081
    %v2489 = vadd.f32 %v2475, %v2082
    %v2490 = vadd.f32 %v2480, %v2083
    %v2491 = vadd.f32 %v2485, %v2084
    %2492 = vst.msk [vmem:[#allocation8] sm:$0xff] %vm88, %v2488
    %2493 = vst.msk [vmem:[#allocation8 + $0x8] sm:$0xff] %vm88, %v2489
    %2494 = vst.msk [vmem:[#allocation8 + $0x10] sm:$0xff] %vm88, %v2490
    %2495 = vst.msk [vmem:[#allocation8 + $0x18] sm:$0xff] %vm88, %v2491
    // Predicated region
    $region66: #{vit_encoder_layer.1} parent=1 // pred_check
      _
    $region67: #{vit_encoder_layer.1} parent=1 // pred_check_branch
      %2497 = sbr.rel (0) target = $region69
    $region68: #{vit_encoder_layer.1} parent=1 // pred_region
      %s2499 = ssub.s32 512, 512
      %2500 = vsyncadd [#allocation4], %s2499
      %s2501 = sshll.u32 [#allocation8], 4
      %s2502 = int_to_ptr.vmem [resolvable:$true] %s2501
      %2507 = dma.vmem_to_hbm [thread:$0]  %s2502, 512, %s13, [#allocation4], 128, 128, 8
    $region69: #{vit_encoder_layer.1} parent=1 // pred_fallthru
      _
    // Predicated region
    $region70: #{vit_encoder_layer.1} parent=1 // pred_check
      _
    $region71: #{vit_encoder_layer.1} parent=1 // pred_check_branch
      %2509 = sbr.rel (0) target = $region73
    $region72: #{vit_encoder_layer.1} parent=1 // pred_region
      %2510 = dma.done [#allocation4], 512
    $region73: #{vit_encoder_layer.1} parent=1 // pred_fallthru
      _
    %2511 = vsyncpa [#allocation3], 1
    %2512 = vsyncpa [#allocation6], 1
    %2513 = vsyncpa [#allocation4], 1

</llo_original>
